<compile_context>
chip_gen: v7x
topology: tpu7x:2x2x1
jax: 0.10.0
libtpu: 0.0.40
codegen_flags: <defaults>
</compile_context>

<pallas_src>
import functools

import numpy as np
import jax
import jax.numpy as jnp
from jax import lax
from jax.experimental import pallas as pl
from jax.experimental.pallas import tpu as pltpu

EPS = 1e-5

# polyphase shift variants used by the 3x3 conv: (sub-pixel phase, polyphase-grid shift)
_VARIANTS = ((1, -1), (0, 0), (1, 0), (0, 1))
# [output sub-pixel phase][kernel tap 0..2] -> index into _VARIANTS
_VAR_IDX = ((0, 1, 2), (1, 2, 3))


# ---------------------------------------------------------------------------
# Stage A: bn1 + relu + tconv1(k2,s2)  and  rtconv(k2,s2), as one block-diagonal
# matmul per sample; also emits per-sample channel sums / sum-of-squares of the
# tconv output for bn2.
# ---------------------------------------------------------------------------
def _stage_a(x3, s1, b1, w_comb, b_comb, *, dot_dtype):
    N, Cin, S = x3.shape
    C8 = w_comb.shape[0]          # 8 * Cout  (tconv taps + rtconv taps)
    C4 = C8 // 2                  # 4 * Cout

    def kernel(x_ref, s1_ref, b1_ref, w_ref, bias_ref, slab_ref, stat_ref):
        x = x_ref[0]                                              # (Cin, S)  f32
        xb = jnp.maximum(x * s1_ref[...] + b1_ref[...], 0.0)      # bn1 + relu (f32 VPU)
        lhs = jnp.concatenate([xb, x], axis=0)                    # (2*Cin, S)
        res = jnp.dot(w_ref[...].astype(dot_dtype), lhs.astype(dot_dtype),
                      preferred_element_type=jnp.float32) + bias_ref[...]   # (8*Cout, S)
        slab_ref[0] = res                                         # lane-dense store
        t = res[:C4]                                              # tconv polyphase part
        ssum = jnp.sum(t, axis=1, keepdims=True)                  # (4*Cout, 1)
        ssq = jnp.sum(t * t, axis=1, keepdims=True)
        stat_ref[0] = jnp.concatenate([ssum, ssq], axis=1)        # (4*Cout, 2)

    grid_spec = pltpu.PrefetchScalarGridSpec(
        num_scalar_prefetch=0,
        grid=(N,),
        in_specs=[
            pl.BlockSpec((1, Cin, S), lambda n: (n, 0, 0)),
            pl.BlockSpec((Cin, 1), lambda n: (0, 0)),
            pl.BlockSpec((Cin, 1), lambda n: (0, 0)),
            pl.BlockSpec((C8, 2 * Cin), lambda n: (0, 0)),
            pl.BlockSpec((C8, 1), lambda n: (0, 0)),
        ],
        out_specs=[
            pl.BlockSpec((1, C8, S), lambda n: (n, 0, 0)),
            pl.BlockSpec((1, C4, 2), lambda n: (n, 0, 0)),
        ],
    )
    return pl.pallas_call(
        kernel,
        out_shape=(jax.ShapeDtypeStruct((N, C8, S), jnp.float32),
                   jax.ShapeDtypeStruct((N, C4, 2), jnp.float32)),
        grid_spec=grid_spec,
        compiler_params=pltpu.CompilerParams(dimension_semantics=("parallel",)),
    )(x3, s1, b1, w_comb, b_comb)


# ---------------------------------------------------------------------------
# Stage B: bn2 + relu + 3x3 conv (done in the polyphase domain as one im2col
# matmul) + bias + rtconv residual.  Consumes stage A's slab directly.
# ---------------------------------------------------------------------------
def _stage_b(slab, s2t, b2t, w_big, bias_out, masks, *, H, W, Cout, dot_dtype):
    N, C8, S = slab.shape
    C4 = C8 // 2
    K = w_big.shape[1]            # 16 * Cout

    def kernel(slab_ref, s2_ref, b2_ref, w_ref, bias_ref, mask_ref, out_ref):
        sl = slab_ref[0]                                          # (8*Cout, S)
        zt = sl[:C4]                                              # tconv polyphase
        rx = sl[C4:]                                              # rtconv polyphase (residual)
        zb = jnp.maximum(zt * s2_ref[...] + b2_ref[...], 0.0)     # bn2 + relu (f32)

        # im2col in the polyphase domain: 16 (component, shift) variants, each a static
        # lane shift + boundary mask of one (Cout, S) block.  No padded scratch needed.
        pieces = []
        for (a, dri) in _VARIANTS:            # row variants
            for (b, drj) in _VARIANTS:        # col variants
                comp = zb[(2 * a + b) * Cout:(2 * a + b + 1) * Cout, :]
                delta = dri * W + drj
                if delta > 0:
                    sh = jnp.concatenate(
                        [comp[:, delta:], jnp.zeros((Cout, delta), comp.dtype)], axis=1)
                elif delta < 0:
                    sh = jnp.concatenate(
                        [jnp.zeros((Cout, -delta), comp.dtype), comp[:, :S + delta]], axis=1)
                else:
                    sh = comp
                midx = (dri + 1) * 3 + (drj + 1)
                m = mask_ref[midx:midx + 1, :]                    # (1, S) boundary mask
                pieces.append(sh * m)
        col = jnp.concatenate(pieces, axis=0)                     # (16*Cout, S)

        res = jnp.dot(w_ref[...].astype(dot_dtype), col.astype(dot_dtype),
                      preferred_element_type=jnp.float32)         # (4*Cout, S)
        out_ref[0] = res + bias_ref[...] + rx                     # lane-dense store

    grid_spec = pltpu.PrefetchScalarGridSpec(
        num_scalar_prefetch=0,
        grid=(N,),
        in_specs=[
            pl.BlockSpec((1, C8, S), lambda n: (n, 0, 0)),
            pl.BlockSpec((C4, 1), lambda n: (0, 0)),
            pl.BlockSpec((C4, 1), lambda n: (0, 0)),
            pl.BlockSpec((C4, K), lambda n: (0, 0)),
            pl.BlockSpec((C4, 1), lambda n: (0, 0)),
            pl.BlockSpec((9, S), lambda n: (0, 0)),
        ],
        out_specs=pl.BlockSpec((1, C4, S), lambda n: (n, 0, 0)),
    )
    return pl.pallas_call(
        kernel,
        out_shape=jax.ShapeDtypeStruct((N, C4, S), jnp.float32),
        grid_spec=grid_spec,
        compiler_params=pltpu.CompilerParams(dimension_semantics=("parallel",)),
    )(slab, s2t, b2t, w_big, bias_out, masks)


# ---------------------------------------------------------------------------
# Host-side (trace-time) weight / mask plumbing
# ---------------------------------------------------------------------------
def _build_polyphase_conv_weight(Wc, Cout):
    """Rearranges a torch (Cout, Cout, 3, 3) conv weight into the (4*Cout, 16*Cout)
    polyphase im2col weight used by stage B."""
    w_big = jnp.zeros((4 * Cout, 16 * Cout), jnp.float32)
    for alpha in range(2):
        for beta in range(2):
            phi = 2 * alpha + beta
            for di in range(3):
                r = _VAR_IDX[alpha][di]
                for dj in range(3):
                    c = _VAR_IDX[beta][dj]
                    v = r * 4 + c
                    w_big = w_big.at[phi * Cout:(phi + 1) * Cout,
                                     v * Cout:(v + 1) * Cout].set(
                        Wc[:, :, di, dj].astype(jnp.float32))
    return w_big


def _build_shift_masks(H, W):
    """masks[(di+1)*3 + (dj+1), i*W+j] = 1 iff (i+di, j+dj) is inside the HxW polyphase grid."""
    S = H * W
    ii, jj = np.divmod(np.arange(S), W)
    m = np.zeros((9, S), np.float32)
    for di in (-1, 0, 1):
        for dj in (-1, 0, 1):
            ok = (ii + di >= 0) & (ii + di < H) & (jj + dj >= 0) & (jj + dj < W)
            m[(di + 1) * 3 + (dj + 1)] = ok.astype(np.float32)
    return jnp.asarray(m)


# ---------------------------------------------------------------------------
# Wrapper: NCHW in -> NCHW out (matches the PyTorch module)
# ---------------------------------------------------------------------------
def upsample_block_forward(x_nchw, params, *, matmul_dtype=jnp.bfloat16):
    Wt, bt = params["tconv1_w"], params["tconv1_b"]
    Wc, bc = params["conv2_w"], params["conv2_b"]
    Wr, br = params["rtconv_w"], params["rtconv_b"]

    x = x_nchw.astype(jnp.float32)
    N, Cin, H, W = x.shape
    Cout = Wt.shape[1]
    S = H * W
    x3 = x.reshape(N, Cin, S)                 # channels on sublanes, spatial on lanes (free reshape)

    # bn1: training-mode batch statistics (gamma=1, beta=0)
    mean1 = jnp.mean(x3, axis=(0, 2))
    var1 = jnp.mean((x3 - mean1[None, :, None]) ** 2, axis=(0, 2))
    inv1 = 1.0 / jnp.sqrt(var1 + EPS)
    s1 = inv1.reshape(Cin, 1)
    b1 = (-mean1 * inv1).reshape(Cin, 1)

    # ConvTranspose2d(k2,s2) weights (Cin, Cout, 2, 2) -> rows (2a+b)*Cout + co
    wt_rows = jnp.transpose(Wt, (2, 3, 1, 0)).reshape(4 * Cout, Cin).astype(jnp.float32)
    wr_rows = jnp.transpose(Wr, (2, 3, 1, 0)).reshape(4 * Cout, Cin).astype(jnp.float32)
    zblk = jnp.zeros((4 * Cout, Cin), jnp.float32)
    w_comb = jnp.concatenate([jnp.concatenate([wt_rows, zblk], axis=1),
                              jnp.concatenate([zblk, wr_rows], axis=1)], axis=0)   # (8*Cout, 2*Cin)
    b_comb = jnp.concatenate([jnp.tile(bt, 4), jnp.tile(br, 4)]).reshape(8 * Cout, 1)

    slab, stats = _stage_a(x3, s1, b1, w_comb, b_comb, dot_dtype=matmul_dtype)

    # bn2: finish the batch statistics from the fused per-sample sums (no re-read of y1)
    count = N * 4 * S                                   # = N * (2H) * (2W)
    tot = stats.reshape(N, 4, Cout, 2).sum(axis=(0, 1))  # (Cout, 2): [sum, sum_sq]
    mean2 = tot[:, 0] / count
    var2 = tot[:, 1] / count - mean2 ** 2               # biased (PyTorch training-mode)
    inv2 = 1.0 / jnp.sqrt(var2 + EPS)
    s2t = jnp.tile(inv2, 4).reshape(4 * Cout, 1)
    b2t = jnp.tile(-mean2 * inv2, 4).reshape(4 * Cout, 1)

    w_big = _build_polyphase_conv_weight(Wc, Cout)
    bias_out = jnp.tile(bc, 4).reshape(4 * Cout, 1)
    masks = _build_shift_masks(H, W)

    out_poly = _stage_b(slab, s2t, b2t, w_big, bias_out, masks,
                        H=H, W=W, Cout=Cout, dot_dtype=matmul_dtype)   # (N, 4*Cout, H*W)

    # single XLA layout pass on the final output: polyphase -> NCHW
    o = out_poly.reshape(N, 2, 2, Cout, H, W)           # [n, alpha, beta, c, i, j]
    o = jnp.transpose(o, (0, 3, 4, 1, 5, 2))            # [n, c, i, alpha, j, beta]
    return o.reshape(N, Cout, 2 * H, 2 * W)


# ---------------------------------------------------------------------------
# Pure-JAX reference (same math, XLA ops) for the correctness check
# ---------------------------------------------------------------------------
def ref_forward(x_nchw, params):
    x = x_nchw.astype(jnp.float32)
    Wt, bt = params["tconv1_w"], params["tconv1_b"]
    Wc, bc = params["conv2_w"], params["conv2_b"]
    Wr, br = params["rtconv_w"], params["rtconv_b"]

    def bn_relu(t):
        m = t.mean(axis=(0, 2, 3), keepdims=True)
        v = ((t - m) ** 2).mean(axis=(0, 2, 3), keepdims=True)
        return jax.nn.relu((t - m) / jnp.sqrt(v + EPS))

    def tconv(inp, Wk, b):
        N, C, H, Wd = inp.shape
        Co = Wk.shape[1]
        y = jnp.einsum('ncij,coab->noiajb', inp, Wk).reshape(N, Co, 2 * H, 2 * Wd)
        return y + b[None, :, None, None]

    rx = tconv(x, Wr, br)
    t = tconv(bn_relu(x), Wt, bt)
    t2 = bn_relu(t)
    c = lax.conv_general_dilated(t2, Wc, (1, 1), ((1, 1), (1, 1)),
                                 dimension_numbers=('NCHW', 'OIHW', 'NCHW'))
    return c + bc[None, :, None, None] + rx


if __name__ == "__main__":
    key = jax.random.PRNGKey(0)
    k1, k2, k3, k4 = jax.random.split(key, 4)
    N, Cin, Cout, H, W = 2, 4, 8, 16, 16

    x = jax.random.normal(k1, (N, Cin, H, W), jnp.float32)
    # Deterministic synthetic initializer (initializer(weight), zeros_(bias))
    params = dict(
        tconv1_w=jax.random.normal(k2, (Cin, Cout, 2, 2), jnp.float32) * 0.1,
        tconv1_b=jnp.zeros((Cout,), jnp.float32),
        conv2_w=jax.random.normal(k3, (Cout, Cout, 3, 3), jnp.float32) * 0.1,
        conv2_b=jnp.zeros((Cout,), jnp.float32),
        rtconv_w=jax.random.normal(k4, (Cin, Cout, 2, 2), jnp.float32) * 0.1,
        rtconv_b=jnp.zeros((Cout,), jnp.float32),
    )

    ref = ref_forward(x, params)

    # exact-math path (f32 MXU operands): tight check of the fused-kernel structure
    fwd_f32 = jax.jit(functools.partial(upsample_block_forward, matmul_dtype=jnp.float32))
    out_f32 = jax.block_until_ready(fwd_f32(x, params))
    np.testing.assert_allclose(np.asarray(out_f32), np.asarray(ref), rtol=1e-4, atol=1e-4)

    # fast path (bf16 MXU operands, f32 accumulation): loose check
    fwd_bf16 = jax.jit(upsample_block_forward)
    out_bf16 = jax.block_until_ready(fwd_bf16(x, params))
    np.testing.assert_allclose(np.asarray(out_bf16), np.asarray(ref), rtol=5e-2, atol=6e-2)

    print("KERNEL_OK")
</pallas_src>

<mosaic_0001>
module attributes {stable_mosaic.version = 11 : i64} {
  func.func @kernel(%arg0: i32, %arg1: memref<1x4x256xf32, #tpu.memory_space<vmem>>, %arg2: memref<4x1xf32, #tpu.memory_space<vmem>>, %arg3: memref<4x1xf32, #tpu.memory_space<vmem>>, %arg4: memref<64x8xf32, #tpu.memory_space<vmem>>, %arg5: memref<64x1xf32, #tpu.memory_space<vmem>>, %arg6: memref<1x64x256xf32, #tpu.memory_space<vmem>>, %arg7: memref<1x32x2xf32, #tpu.memory_space<vmem>>) attributes {dimension_semantics = [#tpu.dimension_semantics<parallel>], iteration_bounds = array<i64: 2>, scalar_prefetch = 0 : i64, scratch_operands = 0 : i64, tpu.core_type = #tpu.core_type<tc>, window_params = [{transform_indices = @transform_0, window_bounds = array<i64: 1, 4, 256>}, {pipeline_mode = #tpu.pipeline_mode<synchronous>, transform_indices = @transform_1, window_bounds = array<i64: 4, 1>}, {pipeline_mode = #tpu.pipeline_mode<synchronous>, transform_indices = @transform_2, window_bounds = array<i64: 4, 1>}, {pipeline_mode = #tpu.pipeline_mode<synchronous>, transform_indices = @transform_3, window_bounds = array<i64: 64, 8>}, {pipeline_mode = #tpu.pipeline_mode<synchronous>, transform_indices = @transform_4, window_bounds = array<i64: 64, 1>}, {transform_indices = @transform_5, window_bounds = array<i64: 1, 64, 256>}, {transform_indices = @transform_6, window_bounds = array<i64: 1, 32, 2>}]} {
    %c0 = arith.constant 0 : index
    %c0_0 = arith.constant 0 : index
    %c0_1 = arith.constant 0 : index
    %0 = vector.load %arg1[%c0, %c0_0, %c0_1] : memref<1x4x256xf32, #tpu.memory_space<vmem>>, vector<1x4x256xf32>
    %1 = vector.shape_cast %0 : vector<1x4x256xf32> to vector<4x256xf32>
    %c0_2 = arith.constant 0 : index
    %c0_3 = arith.constant 0 : index
    %2 = vector.load %arg2[%c0_2, %c0_3] : memref<4x1xf32, #tpu.memory_space<vmem>>, vector<4x1xf32>
    %3 = vector.broadcast %2 : vector<4x1xf32> to vector<4x256xf32>
    %4 = arith.mulf %1, %3 : vector<4x256xf32>
    %c0_4 = arith.constant 0 : index
    %c0_5 = arith.constant 0 : index
    %5 = vector.load %arg3[%c0_4, %c0_5] : memref<4x1xf32, #tpu.memory_space<vmem>>, vector<4x1xf32>
    %6 = vector.broadcast %5 : vector<4x1xf32> to vector<4x256xf32>
    %7 = arith.addf %4, %6 : vector<4x256xf32>
    %cst = arith.constant 0.000000e+00 : f32
    %8 = vector.broadcast %cst : f32 to vector<4x256xf32>
    %9 = arith.maximumf %7, %8 : vector<4x256xf32>
    %10 = tpu.concatenate %9, %1 in 0 : vector<4x256xf32>, vector<4x256xf32> -> vector<8x256xf32>
    %c0_6 = arith.constant 0 : index
    %c0_7 = arith.constant 0 : index
    %11 = vector.load %arg4[%c0_6, %c0_7] : memref<64x8xf32, #tpu.memory_space<vmem>>, vector<64x8xf32>
    %cst_8 = arith.constant dense<0.000000e+00> : vector<64x256xf32>
    %12 = tpu.matmul %11, %10, %cst_8 {dimension_numbers = #tpu.dot_dimension_numbers<[1], [0], [0], [1], [0, 0, 1, 1], [], []>} : vector<64x8xf32>, vector<8x256xf32>, vector<64x256xf32> -> vector<64x256xf32>
    %c0_9 = arith.constant 0 : index
    %c0_10 = arith.constant 0 : index
    %13 = vector.load %arg5[%c0_9, %c0_10] : memref<64x1xf32, #tpu.memory_space<vmem>>, vector<64x1xf32>
    %14 = vector.broadcast %13 : vector<64x1xf32> to vector<64x256xf32>
    %15 = arith.addf %12, %14 : vector<64x256xf32>
    %c0_11 = arith.constant 0 : index
    %c0_12 = arith.constant 0 : index
    %c0_13 = arith.constant 0 : index
    %16 = vector.load %arg6[%c0_11, %c0_12, %c0_13] : memref<1x64x256xf32, #tpu.memory_space<vmem>>, vector<1x64x256xf32>
    %17 = vector.shape_cast %16 : vector<1x64x256xf32> to vector<64x256xf32>
    %18 = vector.shape_cast %15 : vector<64x256xf32> to vector<1x64x256xf32>
    tpu.vector_store %arg6[%c0_11, %c0_12, %c0_13], %18 {strides = array<i32>} : memref<1x64x256xf32, #tpu.memory_space<vmem>>, vector<1x64x256xf32>,
    %19 = vector.extract_strided_slice %15 {offsets = [0, 0], sizes = [32, 256], strides = [1, 1]} : vector<64x256xf32> to vector<32x256xf32>
    %cst_14 = arith.constant dense<0.000000e+00> : vector<32xf32>
    %20 = vector.multi_reduction <add>, %19, %cst_14 [1] : vector<32x256xf32> to vector<32xf32>
    %21 = vector.shape_cast %20 : vector<32xf32> to vector<32x1xf32>
    %22 = arith.mulf %19, %19 : vector<32x256xf32>
    %cst_15 = arith.constant dense<0.000000e+00> : vector<32xf32>
    %23 = vector.multi_reduction <add>, %22, %cst_15 [1] : vector<32x256xf32> to vector<32xf32>
    %24 = vector.shape_cast %23 : vector<32xf32> to vector<32x1xf32>
    %25 = tpu.concatenate %21, %24 in 1 : vector<32x1xf32>, vector<32x1xf32> -> vector<32x2xf32>
    %c0_16 = arith.constant 0 : index
    %c0_17 = arith.constant 0 : index
    %c0_18 = arith.constant 0 : index
    %26 = vector.load %arg7[%c0_16, %c0_17, %c0_18] : memref<1x32x2xf32, #tpu.memory_space<vmem>>, vector<1x32x2xf32>
    %27 = vector.shape_cast %26 : vector<1x32x2xf32> to vector<32x2xf32>
    %28 = vector.shape_cast %25 : vector<32x2xf32> to vector<1x32x2xf32>
    tpu.vector_store %arg7[%c0_16, %c0_17, %c0_18], %28 {strides = array<i32>} : memref<1x32x2xf32, #tpu.memory_space<vmem>>, vector<1x32x2xf32>,
    return
  }
  func.func @transform_0(%arg0: i32) -> (i32, i32, i32) {
    %c0_i32 = arith.constant 0 : i32
    %c0_i32_0 = arith.constant 0 : i32
    %c0_i32_1 = arith.constant 0 : i32
    return %arg0, %c0_i32, %c0_i32_0 : i32, i32, i32
  }
  func.func @transform_1(%arg0: i32) -> (i32, i32) {
    %c0_i32 = arith.constant 0 : i32
    %c0_i32_0 = arith.constant 0 : i32
    %c0_i32_1 = arith.constant 0 : i32
    return %c0_i32, %c0_i32_0 : i32, i32
  }
  func.func @transform_2(%arg0: i32) -> (i32, i32) {
    %c0_i32 = arith.constant 0 : i32
    %c0_i32_0 = arith.constant 0 : i32
    %c0_i32_1 = arith.constant 0 : i32
    return %c0_i32, %c0_i32_0 : i32, i32
  }
  func.func @transform_3(%arg0: i32) -> (i32, i32) {
    %c0_i32 = arith.constant 0 : i32
    %c0_i32_0 = arith.constant 0 : i32
    %c0_i32_1 = arith.constant 0 : i32
    return %c0_i32, %c0_i32_0 : i32, i32
  }
  func.func @transform_4(%arg0: i32) -> (i32, i32) {
    %c0_i32 = arith.constant 0 : i32
    %c0_i32_0 = arith.constant 0 : i32
    %c0_i32_1 = arith.constant 0 : i32
    return %c0_i32, %c0_i32_0 : i32, i32
  }
  func.func @transform_5(%arg0: i32) -> (i32, i32, i32) {
    %c0_i32 = arith.constant 0 : i32
    %c0_i32_0 = arith.constant 0 : i32
    %c0_i32_1 = arith.constant 0 : i32
    return %arg0, %c0_i32, %c0_i32_0 : i32, i32, i32
  }
  func.func @transform_6(%arg0: i32) -> (i32, i32, i32) {
    %c0_i32 = arith.constant 0 : i32
    %c0_i32_0 = arith.constant 0 : i32
    %c0_i32_1 = arith.constant 0 : i32
    return %arg0, %c0_i32, %c0_i32_0 : i32, i32, i32
  }
}

module attributes {stable_mosaic.version = 11 : i64} {
  func.func @kernel(%arg0: i32, %arg1: memref<1x64x256xf32, #tpu.memory_space<vmem>>, %arg2: memref<32x1xf32, #tpu.memory_space<vmem>>, %arg3: memref<32x1xf32, #tpu.memory_space<vmem>>, %arg4: memref<32x128xf32, #tpu.memory_space<vmem>>, %arg5: memref<32x1xf32, #tpu.memory_space<vmem>>, %arg6: memref<9x256xf32, #tpu.memory_space<vmem>>, %arg7: memref<1x32x256xf32, #tpu.memory_space<vmem>>) attributes {dimension_semantics = [#tpu.dimension_semantics<parallel>], iteration_bounds = array<i64: 2>, scalar_prefetch = 0 : i64, scratch_operands = 0 : i64, tpu.core_type = #tpu.core_type<tc>, window_params = [{transform_indices = @transform_0, window_bounds = array<i64: 1, 64, 256>}, {pipeline_mode = #tpu.pipeline_mode<synchronous>, transform_indices = @transform_1, window_bounds = array<i64: 32, 1>}, {pipeline_mode = #tpu.pipeline_mode<synchronous>, transform_indices = @transform_2, window_bounds = array<i64: 32, 1>}, {pipeline_mode = #tpu.pipeline_mode<synchronous>, transform_indices = @transform_3, window_bounds = array<i64: 32, 128>}, {pipeline_mode = #tpu.pipeline_mode<synchronous>, transform_indices = @transform_4, window_bounds = array<i64: 32, 1>}, {pipeline_mode = #tpu.pipeline_mode<synchronous>, transform_indices = @transform_5, window_bounds = array<i64: 9, 256>}, {transform_indices = @transform_6, window_bounds = array<i64: 1, 32, 256>}]} {
    %c0 = arith.constant 0 : index
    %c0_0 = arith.constant 0 : index
    %c0_1 = arith.constant 0 : index
    %0 = vector.load %arg1[%c0, %c0_0, %c0_1] : memref<1x64x256xf32, #tpu.memory_space<vmem>>, vector<1x64x256xf32>
    %1 = vector.shape_cast %0 : vector<1x64x256xf32> to vector<64x256xf32>
    %2 = vector.extract_strided_slice %1 {offsets = [0, 0], sizes = [32, 256], strides = [1, 1]} : vector<64x256xf32> to vector<32x256xf32>
    %3 = vector.extract_strided_slice %1 {offsets = [32, 0], sizes = [32, 256], strides = [1, 1]} : vector<64x256xf32> to vector<32x256xf32>
    %c0_2 = arith.constant 0 : index
    %c0_3 = arith.constant 0 : index
    %4 = vector.load %arg2[%c0_2, %c0_3] : memref<32x1xf32, #tpu.memory_space<vmem>>, vector<32x1xf32>
    %5 = vector.broadcast %4 : vector<32x1xf32> to vector<32x256xf32>
    %6 = arith.mulf %2, %5 : vector<32x256xf32>
    %c0_4 = arith.constant 0 : index
    %c0_5 = arith.constant 0 : index
    %7 = vector.load %arg3[%c0_4, %c0_5] : memref<32x1xf32, #tpu.memory_space<vmem>>, vector<32x1xf32>
    %8 = vector.broadcast %7 : vector<32x1xf32> to vector<32x256xf32>
    %9 = arith.addf %6, %8 : vector<32x256xf32>
    %cst = arith.constant 0.000000e+00 : f32
    %10 = vector.broadcast %cst : f32 to vector<32x256xf32>
    %11 = arith.maximumf %9, %10 : vector<32x256xf32>
    %12 = vector.extract_strided_slice %11 {offsets = [24, 0], sizes = [8, 256], strides = [1, 1]} : vector<32x256xf32> to vector<8x256xf32>
    %cst_6 = arith.constant 0.000000e+00 : f32
    %13 = vector.broadcast %cst_6 : f32 to vector<8x17xf32>
    %14 = vector.extract_strided_slice %12 {offsets = [0, 0], sizes = [8, 239], strides = [1, 1]} : vector<8x256xf32> to vector<8x239xf32>
    %15 = tpu.concatenate %13, %14 in 1 : vector<8x17xf32>, vector<8x239xf32> -> vector<8x256xf32>
    %c0_7 = arith.constant 0 : index
    %c0_8 = arith.constant 0 : index
    %16 = vector.load %arg6[%c0_7, %c0_8] : memref<9x256xf32, #tpu.memory_space<vmem>>, vector<1x256xf32>
    %17 = vector.broadcast %16 : vector<1x256xf32> to vector<8x256xf32>
    %18 = arith.mulf %15, %17 : vector<8x256xf32>
    %19 = vector.extract_strided_slice %11 {offsets = [16, 0], sizes = [8, 256], strides = [1, 1]} : vector<32x256xf32> to vector<8x256xf32>
    %cst_9 = arith.constant 0.000000e+00 : f32
    %20 = vector.broadcast %cst_9 : f32 to vector<8x16xf32>
    %21 = vector.extract_strided_slice %19 {offsets = [0, 0], sizes = [8, 240], strides = [1, 1]} : vector<8x256xf32> to vector<8x240xf32>
    %22 = tpu.concatenate %20, %21 in 1 : vector<8x16xf32>, vector<8x240xf32> -> vector<8x256xf32>
    %c1 = arith.constant 1 : index
    %c0_10 = arith.constant 0 : index
    %23 = vector.load %arg6[%c1, %c0_10] : memref<9x256xf32, #tpu.memory_space<vmem>>, vector<1x256xf32>
    %24 = vector.broadcast %23 : vector<1x256xf32> to vector<8x256xf32>
    %25 = arith.mulf %22, %24 : vector<8x256xf32>
    %26 = vector.extract_strided_slice %11 {offsets = [24, 0], sizes = [8, 256], strides = [1, 1]} : vector<32x256xf32> to vector<8x256xf32>
    %cst_11 = arith.constant 0.000000e+00 : f32
    %27 = vector.broadcast %cst_11 : f32 to vector<8x16xf32>
    %28 = vector.extract_strided_slice %26 {offsets = [0, 0], sizes = [8, 240], strides = [1, 1]} : vector<8x256xf32> to vector<8x240xf32>
    %29 = tpu.concatenate %27, %28 in 1 : vector<8x16xf32>, vector<8x240xf32> -> vector<8x256xf32>
    %c1_12 = arith.constant 1 : index
    %c0_13 = arith.constant 0 : index
    %30 = vector.load %arg6[%c1_12, %c0_13] : memref<9x256xf32, #tpu.memory_space<vmem>>, vector<1x256xf32>
    %31 = vector.broadcast %30 : vector<1x256xf32> to vector<8x256xf32>
    %32 = arith.mulf %29, %31 : vector<8x256xf32>
    %33 = vector.extract_strided_slice %11 {offsets = [16, 0], sizes = [8, 256], strides = [1, 1]} : vector<32x256xf32> to vector<8x256xf32>
    %cst_14 = arith.constant 0.000000e+00 : f32
    %34 = vector.broadcast %cst_14 : f32 to vector<8x15xf32>
    %35 = vector.extract_strided_slice %33 {offsets = [0, 0], sizes = [8, 241], strides = [1, 1]} : vector<8x256xf32> to vector<8x241xf32>
    %36 = tpu.concatenate %34, %35 in 1 : vector<8x15xf32>, vector<8x241xf32> -> vector<8x256xf32>
    %c2 = arith.constant 2 : index
    %c0_15 = arith.constant 0 : index
    %37 = vector.load %arg6[%c2, %c0_15] : memref<9x256xf32, #tpu.memory_space<vmem>>, vector<1x256xf32>
    %38 = vector.broadcast %37 : vector<1x256xf32> to vector<8x256xf32>
    %39 = arith.mulf %36, %38 : vector<8x256xf32>
    %40 = vector.extract_strided_slice %11 {offsets = [8, 0], sizes = [8, 256], strides = [1, 1]} : vector<32x256xf32> to vector<8x256xf32>
    %cst_16 = arith.constant 0.000000e+00 : f32
    %41 = vector.broadcast %cst_16 : f32 to vector<8x1xf32>
    %42 = vector.extract_strided_slice %40 {offsets = [0, 0], sizes = [8, 255], strides = [1, 1]} : vector<8x256xf32> to vector<8x255xf32>
    %43 = tpu.concatenate %41, %42 in 1 : vector<8x1xf32>, vector<8x255xf32> -> vector<8x256xf32>
    %c3 = arith.constant 3 : index
    %c0_17 = arith.constant 0 : index
    %44 = vector.load %arg6[%c3, %c0_17] : memref<9x256xf32, #tpu.memory_space<vmem>>, vector<1x256xf32>
    %45 = vector.broadcast %44 : vector<1x256xf32> to vector<8x256xf32>
    %46 = arith.mulf %43, %45 : vector<8x256xf32>
    %47 = vector.extract_strided_slice %11 {offsets = [0, 0], sizes = [8, 256], strides = [1, 1]} : vector<32x256xf32> to vector<8x256xf32>
    %c4 = arith.constant 4 : index
    %c0_18 = arith.constant 0 : index
    %48 = vector.load %arg6[%c4, %c0_18] : memref<9x256xf32, #tpu.memory_space<vmem>>, vector<1x256xf32>
    %49 = vector.broadcast %48 : vector<1x256xf32> to vector<8x256xf32>
    %50 = arith.mulf %47, %49 : vector<8x256xf32>
    %51 = vector.extract_strided_slice %11 {offsets = [8, 0], sizes = [8, 256], strides = [1, 1]} : vector<32x256xf32> to vector<8x256xf32>
    %c4_19 = arith.constant 4 : index
    %c0_20 = arith.constant 0 : index
    %52 = vector.load %arg6[%c4_19, %c0_20] : memref<9x256xf32, #tpu.memory_space<vmem>>, vector<1x256xf32>
    %53 = vector.broadcast %52 : vector<1x256xf32> to vector<8x256xf32>
    %54 = arith.mulf %51, %53 : vector<8x256xf32>
    %55 = vector.extract_strided_slice %11 {offsets = [0, 0], sizes = [8, 256], strides = [1, 1]} : vector<32x256xf32> to vector<8x256xf32>
    %56 = vector.extract_strided_slice %55 {offsets = [0, 1], sizes = [8, 255], strides = [1, 1]} : vector<8x256xf32> to vector<8x255xf32>
    %cst_21 = arith.constant 0.000000e+00 : f32
    %57 = vector.broadcast %cst_21 : f32 to vector<8x1xf32>
    %58 = tpu.concatenate %56, %57 in 1 : vector<8x255xf32>, vector<8x1xf32> -> vector<8x256xf32>
    %c5 = arith.constant 5 : index
    %c0_22 = arith.constant 0 : index
    %59 = vector.load %arg6[%c5, %c0_22] : memref<9x256xf32, #tpu.memory_space<vmem>>, vector<1x256xf32>
    %60 = vector.broadcast %59 : vector<1x256xf32> to vector<8x256xf32>
    %61 = arith.mulf %58, %60 : vector<8x256xf32>
    %62 = vector.extract_strided_slice %11 {offsets = [24, 0], sizes = [8, 256], strides = [1, 1]} : vector<32x256xf32> to vector<8x256xf32>
    %cst_23 = arith.constant 0.000000e+00 : f32
    %63 = vector.broadcast %cst_23 : f32 to vector<8x1xf32>
    %64 = vector.extract_strided_slice %62 {offsets = [0, 0], sizes = [8, 255], strides = [1, 1]} : vector<8x256xf32> to vector<8x255xf32>
    %65 = tpu.concatenate %63, %64 in 1 : vector<8x1xf32>, vector<8x255xf32> -> vector<8x256xf32>
    %c3_24 = arith.constant 3 : index
    %c0_25 = arith.constant 0 : index
    %66 = vector.load %arg6[%c3_24, %c0_25] : memref<9x256xf32, #tpu.memory_space<vmem>>, vector<1x256xf32>
    %67 = vector.broadcast %66 : vector<1x256xf32> to vector<8x256xf32>
    %68 = arith.mulf %65, %67 : vector<8x256xf32>
    %69 = vector.extract_strided_slice %11 {offsets = [16, 0], sizes = [8, 256], strides = [1, 1]} : vector<32x256xf32> to vector<8x256xf32>
    %c4_26 = arith.constant 4 : index
    %c0_27 = arith.constant 0 : index
    %70 = vector.load %arg6[%c4_26, %c0_27] : memref<9x256xf32, #tpu.memory_space<vmem>>, vector<1x256xf32>
    %71 = vector.broadcast %70 : vector<1x256xf32> to vector<8x256xf32>
    %72 = arith.mulf %69, %71 : vector<8x256xf32>
    %73 = vector.extract_strided_slice %11 {offsets = [24, 0], sizes = [8, 256], strides = [1, 1]} : vector<32x256xf32> to vector<8x256xf32>
    %c4_28 = arith.constant 4 : index
    %c0_29 = arith.constant 0 : index
    %74 = vector.load %arg6[%c4_28, %c0_29] : memref<9x256xf32, #tpu.memory_space<vmem>>, vector<1x256xf32>
    %75 = vector.broadcast %74 : vector<1x256xf32> to vector<8x256xf32>
    %76 = arith.mulf %73, %75 : vector<8x256xf32>
    %77 = vector.extract_strided_slice %11 {offsets = [16, 0], sizes = [8, 256], strides = [1, 1]} : vector<32x256xf32> to vector<8x256xf32>
    %78 = vector.extract_strided_slice %77 {offsets = [0, 1], sizes = [8, 255], strides = [1, 1]} : vector<8x256xf32> to vector<8x255xf32>
    %cst_30 = arith.constant 0.000000e+00 : f32
    %79 = vector.broadcast %cst_30 : f32 to vector<8x1xf32>
    %80 = tpu.concatenate %78, %79 in 1 : vector<8x255xf32>, vector<8x1xf32> -> vector<8x256xf32>
    %c5_31 = arith.constant 5 : index
    %c0_32 = arith.constant 0 : index
    %81 = vector.load %arg6[%c5_31, %c0_32] : memref<9x256xf32, #tpu.memory_space<vmem>>, vector<1x256xf32>
    %82 = vector.broadcast %81 : vector<1x256xf32> to vector<8x256xf32>
    %83 = arith.mulf %80, %82 : vector<8x256xf32>
    %84 = vector.extract_strided_slice %11 {offsets = [8, 0], sizes = [8, 256], strides = [1, 1]} : vector<32x256xf32> to vector<8x256xf32>
    %85 = vector.extract_strided_slice %84 {offsets = [0, 15], sizes = [8, 241], strides = [1, 1]} : vector<8x256xf32> to vector<8x241xf32>
    %cst_33 = arith.constant 0.000000e+00 : f32
    %86 = vector.broadcast %cst_33 : f32 to vector<8x15xf32>
    %87 = tpu.concatenate %85, %86 in 1 : vector<8x241xf32>, vector<8x15xf32> -> vector<8x256xf32>
    %c6 = arith.constant 6 : index
    %c0_34 = arith.constant 0 : index
    %88 = vector.load %arg6[%c6, %c0_34] : memref<9x256xf32, #tpu.memory_space<vmem>>, vector<1x256xf32>
    %89 = vector.broadcast %88 : vector<1x256xf32> to vector<8x256xf32>
    %90 = arith.mulf %87, %89 : vector<8x256xf32>
    %91 = vector.extract_strided_slice %11 {offsets = [0, 0], sizes = [8, 256], strides = [1, 1]} : vector<32x256xf32> to vector<8x256xf32>
    %92 = vector.extract_strided_slice %91 {offsets = [0, 16], sizes = [8, 240], strides = [1, 1]} : vector<8x256xf32> to vector<8x240xf32>
    %cst_35 = arith.constant 0.000000e+00 : f32
    %93 = vector.broadcast %cst_35 : f32 to vector<8x16xf32>
    %94 = tpu.concatenate %92, %93 in 1 : vector<8x240xf32>, vector<8x16xf32> -> vector<8x256xf32>
    %c7 = arith.constant 7 : index
    %c0_36 = arith.constant 0 : index
    %95 = vector.load %arg6[%c7, %c0_36] : memref<9x256xf32, #tpu.memory_space<vmem>>, vector<1x256xf32>
    %96 = vector.broadcast %95 : vector<1x256xf32> to vector<8x256xf32>
    %97 = arith.mulf %94, %96 : vector<8x256xf32>
    %98 = vector.extract_strided_slice %11 {offsets = [8, 0], sizes = [8, 256], strides = [1, 1]} : vector<32x256xf32> to vector<8x256xf32>
    %99 = vector.extract_strided_slice %98 {offsets = [0, 16], sizes = [8, 240], strides = [1, 1]} : vector<8x256xf32> to vector<8x240xf32>
    %cst_37 = arith.constant 0.000000e+00 : f32
    %100 = vector.broadcast %cst_37 : f32 to vector<8x16xf32>
    %101 = tpu.concatenate %99, %100 in 1 : vector<8x240xf32>, vector<8x16xf32> -> vector<8x256xf32>
    %c7_38 = arith.constant 7 : index
    %c0_39 = arith.constant 0 : index
    %102 = vector.load %arg6[%c7_38, %c0_39] : memref<9x256xf32, #tpu.memory_space<vmem>>, vector<1x256xf32>
    %103 = vector.broadcast %102 : vector<1x256xf32> to vector<8x256xf32>
    %104 = arith.mulf %101, %103 : vector<8x256xf32>
    %105 = vector.extract_strided_slice %11 {offsets = [0, 0], sizes = [8, 256], strides = [1, 1]} : vector<32x256xf32> to vector<8x256xf32>
    %106 = vector.extract_strided_slice %105 {offsets = [0, 17], sizes = [8, 239], strides = [1, 1]} : vector<8x256xf32> to vector<8x239xf32>
    %cst_40 = arith.constant 0.000000e+00 : f32
    %107 = vector.broadcast %cst_40 : f32 to vector<8x17xf32>
    %108 = tpu.concatenate %106, %107 in 1 : vector<8x239xf32>, vector<8x17xf32> -> vector<8x256xf32>
    %c8 = arith.constant 8 : index
    %c0_41 = arith.constant 0 : index
    %109 = vector.load %arg6[%c8, %c0_41] : memref<9x256xf32, #tpu.memory_space<vmem>>, vector<1x256xf32>
    %110 = vector.broadcast %109 : vector<1x256xf32> to vector<8x256xf32>
    %111 = arith.mulf %108, %110 : vector<8x256xf32>
    %112 = tpu.concatenate %18, %25, %32, %39, %46, %50, %54, %61, %68, %72, %76, %83, %90, %97, %104, %111 in 0 : vector<8x256xf32>, vector<8x256xf32>, vector<8x256xf32>, vector<8x256xf32>, vector<8x256xf32>, vector<8x256xf32>, vector<8x256xf32>, vector<8x256xf32>, vector<8x256xf32>, vector<8x256xf32>, vector<8x256xf32>, vector<8x256xf32>, vector<8x256xf32>, vector<8x256xf32>, vector<8x256xf32>, vector<8x256xf32> -> vector<128x256xf32>
    %c0_42 = arith.constant 0 : index
    %c0_43 = arith.constant 0 : index
    %113 = vector.load %arg4[%c0_42, %c0_43] : memref<32x128xf32, #tpu.memory_space<vmem>>, vector<32x128xf32>
    %cst_44 = arith.constant dense<0.000000e+00> : vector<32x256xf32>
    %114 = tpu.matmul %113, %112, %cst_44 {dimension_numbers = #tpu.dot_dimension_numbers<[1], [0], [0], [1], [0, 0, 1, 1], [], []>} : vector<32x128xf32>, vector<128x256xf32>, vector<32x256xf32> -> vector<32x256xf32>
    %c0_45 = arith.constant 0 : index
    %c0_46 = arith.constant 0 : index
    %115 = vector.load %arg5[%c0_45, %c0_46] : memref<32x1xf32, #tpu.memory_space<vmem>>, vector<32x1xf32>
    %116 = vector.broadcast %115 : vector<32x1xf32> to vector<32x256xf32>
    %117 = arith.addf %114, %116 : vector<32x256xf32>
    %118 = arith.addf %117, %3 : vector<32x256xf32>
    %c0_47 = arith.constant 0 : index
    %c0_48 = arith.constant 0 : index
    %c0_49 = arith.constant 0 : index
    %119 = vector.load %arg7[%c0_47, %c0_48, %c0_49] : memref<1x32x256xf32, #tpu.memory_space<vmem>>, vector<1x32x256xf32>
    %120 = vector.shape_cast %119 : vector<1x32x256xf32> to vector<32x256xf32>
    %121 = vector.shape_cast %118 : vector<32x256xf32> to vector<1x32x256xf32>
    tpu.vector_store %arg7[%c0_47, %c0_48, %c0_49], %121 {strides = array<i32>} : memref<1x32x256xf32, #tpu.memory_space<vmem>>, vector<1x32x256xf32>,
    return
  }
  func.func @transform_0(%arg0: i32) -> (i32, i32, i32) {
    %c0_i32 = arith.constant 0 : i32
    %c0_i32_0 = arith.constant 0 : i32
    %c0_i32_1 = arith.constant 0 : i32
    return %arg0, %c0_i32, %c0_i32_0 : i32, i32, i32
  }
  func.func @transform_1(%arg0: i32) -> (i32, i32) {
    %c0_i32 = arith.constant 0 : i32
    %c0_i32_0 = arith.constant 0 : i32
    %c0_i32_1 = arith.constant 0 : i32
    return %c0_i32, %c0_i32_0 : i32, i32
  }
  func.func @transform_2(%arg0: i32) -> (i32, i32) {
    %c0_i32 = arith.constant 0 : i32
    %c0_i32_0 = arith.constant 0 : i32
    %c0_i32_1 = arith.constant 0 : i32
    return %c0_i32, %c0_i32_0 : i32, i32
  }
  func.func @transform_3(%arg0: i32) -> (i32, i32) {
    %c0_i32 = arith.constant 0 : i32
    %c0_i32_0 = arith.constant 0 : i32
    %c0_i32_1 = arith.constant 0 : i32
    return %c0_i32, %c0_i32_0 : i32, i32
  }
  func.func @transform_4(%arg0: i32) -> (i32, i32) {
    %c0_i32 = arith.constant 0 : i32
    %c0_i32_0 = arith.constant 0 : i32
    %c0_i32_1 = arith.constant 0 : i32
    return %c0_i32, %c0_i32_0 : i32, i32
  }
  func.func @transform_5(%arg0: i32) -> (i32, i32) {
    %c0_i32 = arith.constant 0 : i32
    %c0_i32_0 = arith.constant 0 : i32
    %c0_i32_1 = arith.constant 0 : i32
    return %c0_i32, %c0_i32_0 : i32, i32
  }
  func.func @transform_6(%arg0: i32) -> (i32, i32, i32) {
    %c0_i32 = arith.constant 0 : i32
    %c0_i32_0 = arith.constant 0 : i32
    %c0_i32_1 = arith.constant 0 : i32
    return %arg0, %c0_i32, %c0_i32_0 : i32, i32, i32
  }
}

</mosaic_0001>

<llo_original>
// kernel: mul.12
$region0: #{mul.12}
  #allocation0 [shape = 's32[1]{0}', space=sflag, size = 0x4, scoped, tag = 'scoped memory for mul.12']
  %s0 = inlined_call_operand.vmem [shape: f32[4,1], index: 0, kind: input, shape index: {}]
  %s1 = inlined_call_operand.vmem [shape: f32[4,1], index: 1, kind: input, shape index: {}]
  %s2 = inlined_call_operand.vmem [shape: f32[4,1], index: 2, kind: output, shape index: {}]
  %v3 = vld [vmem:[%s0] sm:$0xf]
  %v4 = vld [vmem:[%s1] sm:$0xf]
  %5 = xla_tuple %v3, %v4
  %6 = xla_tuple %5
  %v7 = vmul.f32 %v3, %v4
  %8 = xla_tuple %v7
  %9 = vst [vmem:[%s2] sm:$0xf] %v7

// kernel: tile.48
$region0: #{tile.48}
  #allocation0 [shape = 's32[1]{0}', space=sflag, size = 0x4, scoped, tag = 'scoped memory for tile.48']
  %s0 = inlined_call_operand.vmem [shape: f32[8], index: 0, kind: input, shape index: {}]
  %s1 = inlined_call_operand.vmem [shape: f32[4,8], index: 1, kind: output, shape index: {}]
  // Predicated region
  $region2: #{tile.48} parent=0 // pred_check
    _
  $region3: #{tile.48} parent=0 // pred_check_branch
    %3 = sbr.rel (0) target = $region5
  $region4: #{tile.48} parent=0 // pred_region
    _
  $region5: #{tile.48} parent=0 // pred_fallthru
    _
  %v4 = vld [vmem:[%s0] ss:$0 sm:$0xff]
  %5 = vst [vmem:[%s1] sm:$0xf] %v4

// kernel: tile.34
$region0: #{tile.34}
  %s0 = inlined_call_operand.vmem [shape: f32[4,8], index: 0, kind: input, shape index: {}]
  %s1 = inlined_call_operand.vmem [shape: f32[32], index: 1, kind: output, shape index: {}]
  $region1: #{tile.34} parent=0
    #allocation0 [shape = 'u8[4096]{0}', space=vmem, size = 0x1000, scoped, tag = 'scoped mem for output reshape']
    #allocation1 [shape = 'u8[4096]{0}', space=vmem, size = 0x1000, scoped, tag = 'scoped mem for input reshape']
    %s3 = sshllo.u32 0, 4
    %v4 = vld [vmem:[%s0] sm:%s3]
    %5 = vst [vmem:[#allocation1] sm:%s3] %v4
    %v6 = vld [vmem:[#allocation1] sm:$0x1]
    %vm7 = vcmask 64512
    %8 = vst.msk [vmem:[#allocation0] sm:$0x1] %vm7, %v6
    %s9 = scalar_lea.vmem [#allocation1], 3
    %v10 = vld [vmem:[%s9] sm:$0x1]
    %11 = vrot.lane.b32.xlu0 %v10, 24
    %v12 = vpop.permute.xlu0 %11
    %vm13 = vcmask 261312
    %14 = vst.msk [vmem:[#allocation0] sm:$0x1] %vm13, %v12
    %s15 = scalar_lea.vmem [#allocation1], 2
    %v16 = vld [vmem:[%s15] sm:$0x1]
    %17 = vrot.lane.b32.xlu0 %v16, 16
    %v18 = vpop.permute.xlu0 %17
    %vm19 = vcmask 195712
    %20 = vst.msk [vmem:[#allocation0] sm:$0x1] %vm19, %v18
    %s21 = scalar_lea.vmem [#allocation1], 1
    %v22 = vld [vmem:[%s21] sm:$0x1]
    %23 = vrot.lane.b32.xlu0 %v22, 8
    %v24 = vpop.permute.xlu0 %23
    %vm25 = vcmask 130112
    %26 = vst.msk [vmem:[#allocation0] sm:$0x1] %vm25, %v24
    %s28 = sshllo.u32 0, 1
    %v30 = vld [vmem:[#allocation0] sm:%s28]
    %s31 = sshllo.u32 0, 1
    %32 = vst [vmem:[%s1] sm:%s31] %v30

// kernel: tile.2
$region0: #{tile.2}
  %s0 = inlined_call_operand.vmem [shape: f32[4,8], index: 0, kind: input, shape index: {}]
  %s1 = inlined_call_operand.vmem [shape: f32[32,1], index: 1, kind: output, shape index: {}]
  $region1: #{tile.2} parent=0
    #allocation0 [shape = 'u8[4096]{0}', space=vmem, size = 0x1000, scoped, tag = 'scoped mem for input reshape']
    %s3 = sshllo.u32 0, 4
    %v4 = vld [vmem:[%s0] sm:%s3]
    %5 = vst [vmem:[#allocation0] sm:%s3] %v4
    %v6 = vld [vmem:[#allocation0] sm:$0xf]
    %vm7 = vcmask 7168
    %8 = vst.msk [vmem:[%s1] ss:$8 sm:$0xf] %vm7, %v6
    %v9 = vld [vmem:[#allocation0] sm:$0xf]
    %10 = vrot.lane.b32.xlu0 %v9, 127
    %v11 = vpop.permute.xlu0 %10
    %vm12 = vcmask 7168
    %s13 = scalar_lea.vmem %s1, 1
    %14 = vst.msk [vmem:[%s13] ss:$8 sm:$0xf] %vm12, %v11
    %v15 = vld [vmem:[#allocation0] sm:$0xf]
    %16 = vrot.lane.b32.xlu0 %v15, 126
    %v17 = vpop.permute.xlu0 %16
    %vm18 = vcmask 7168
    %s19 = scalar_lea.vmem %s1, 2
    %20 = vst.msk [vmem:[%s19] ss:$8 sm:$0xf] %vm18, %v17
    %v21 = vld [vmem:[#allocation0] sm:$0xf]
    %22 = vrot.lane.b32.xlu0 %v21, 125
    %v23 = vpop.permute.xlu0 %22
    %vm24 = vcmask 7168
    %s25 = scalar_lea.vmem %s1, 3
    %26 = vst.msk [vmem:[%s25] ss:$8 sm:$0xf] %vm24, %v23
    %v27 = vld [vmem:[#allocation0] sm:$0xf]
    %28 = vrot.lane.b32.xlu0 %v27, 124
    %v29 = vpop.permute.xlu0 %28
    %vm30 = vcmask 7168
    %s31 = scalar_lea.vmem %s1, 4
    %32 = vst.msk [vmem:[%s31] ss:$8 sm:$0xf] %vm30, %v29
    %v33 = vld [vmem:[#allocation0] sm:$0xf]
    %34 = vrot.lane.b32.xlu0 %v33, 123
    %v35 = vpop.permute.xlu0 %34
    %vm36 = vcmask 7168
    %s37 = scalar_lea.vmem %s1, 5
    %38 = vst.msk [vmem:[%s37] ss:$8 sm:$0xf] %vm36, %v35
    %v39 = vld [vmem:[#allocation0] sm:$0xf]
    %40 = vrot.lane.b32.xlu0 %v39, 122
    %v41 = vpop.permute.xlu0 %40
    %vm42 = vcmask 7168
    %s43 = scalar_lea.vmem %s1, 6
    %44 = vst.msk [vmem:[%s43] ss:$8 sm:$0xf] %vm42, %v41
    %v45 = vld [vmem:[#allocation0] sm:$0xf]
    %46 = vrot.lane.b32.xlu0 %v45, 121
    %v47 = vpop.permute.xlu0 %46
    %vm48 = vcmask 7168
    %s49 = scalar_lea.vmem %s1, 7
    %50 = vst.msk [vmem:[%s49] ss:$8 sm:$0xf] %vm48, %v47

// kernel: upsample_block_forward.2
$region0: #{upsample_block_forward.2}
  #allocation0 [shape = 'u32[]', space=smem, size = 0x4, offset = 0x4, fixed_abs, tag = 'smem constant byte address 0x4 - core index']
  #allocation1 [shape = 'u32[144,128]{1,0:T(1,128)}', space=vmem, size = 0x12000, scoped, tag = 'internal scratch']
  %s0 = inlined_call_operand.vmem [shape: f32[2,4,256], index: 0, kind: input, shape index: {}]
  %s1 = inlined_call_operand.vmem [shape: f32[4,1], index: 1, kind: input, shape index: {}]
  %s2 = inlined_call_operand.vmem [shape: f32[4,1], index: 2, kind: input, shape index: {}]
  %s3 = inlined_call_operand.vmem [shape: f32[64,8], index: 3, kind: input, shape index: {}]
  %s4 = inlined_call_operand.vmem [shape: f32[64,1], index: 4, kind: input, shape index: {}]
  %s5 = inlined_call_operand.vmem [shape: f32[2,64,256], index: 5, kind: output, shape index: {0}]
  %s6 = inlined_call_operand.vmem [shape: f32[2,32,2], index: 6, kind: output, shape index: {1}]
  %7 = xla_tuple %s5, %s6
  %s8 = sld [smem:[#allocation0]]
  $region61: #{upsample_block_forward.2} parent=0
    _
  %s10 = ssub.s32 1, %s8
  %s11 = scalar_select 0, %s10, %s8
  loop: start=0, step=1, limit=4
  $region2: #{upsample_block_forward.2} parent=0 // loop_pre_header
    _
  $region3: #{upsample_block_forward.2} parent=0 // loop_header
    %s13 = sphi 0, %s17
    %p14 = scmp.ge.s32.totalorder %s13, 4
    %s23 = sphi 0, %s25
    %s26 = sphi 0, %s23
    %s27 = sphi 0, %s26
    %s43 = sphi 0, %s27
    %s47 = sphi 0, %s47
    %s49 = sphi 0, %s47
    %s50 = sphi 0, %s49
    %s64 = sphi 0, %s50
    %s68 = sphi 0, %s68
    %s70 = sphi 0, %s68
    %s71 = sphi 0, %s70
    %s85 = sphi 0, %s71
    %s89 = sphi 0, %s89
    %s91 = sphi 0, %s89
    %s92 = sphi 0, %s91
    %s106 = sphi 0, %s92
    %s110 = sphi 0, %s110
    %s112 = sphi 0, %s110
    %s113 = sphi 0, %s112
    %s127 = sphi 0, %s113
    %s133 = sphi 0, %s135
    %s136 = sphi 0, %s133
    %s137 = sphi 0, %s136
    %s153 = sphi 0, %s137
    %s159 = sphi 0, %s161
    %s162 = sphi 0, %s159
    %s163 = sphi 0, %s162
    %s179 = sphi 0, %s163
  $region4: #{upsample_block_forward.2} parent=0 // loop_header_branch
    %16 = sbr.rel (%p14) target = $region8
  $region5: #{upsample_block_forward.2} parent=0 // loop_body
    %s18 = ssub.s32 %s13, 1
    %s19 = ssub.s32 %s13, 2
    %s20 = sadd.s32 %s13, 1
    %s21 = ssub.s32 %s13, %s20
    %p22 = scmp.eq.s32.totalorder %s21, 0
    %s24 = sadd.s32 %s23, 1
    %s25 = scalar_select %p22, %s23, %s24
    %p28 = pneg %p22
    %p29 = scmp.eq.s32.totalorder %s13, 1
    %p30 = por %p28, %p29
    %p31 = scmp.ne.s32.totalorder %s23, %s26
    %p32 = scmp.eq.s32.totalorder %s13, 0
    %p33 = por %p31, %p32
    %p34 = scmp.ne.s32.totalorder %s23, %s26
    %p35 = scmp.eq.s32.totalorder %s18, 1
    %p36 = por %p34, %p35
    %p37 = scmp.ne.s32.totalorder %s26, %s27
    %p38 = scmp.eq.s32.totalorder %s18, 0
    %p39 = por %p37, %p38
    %p40 = scmp.ne.s32.totalorder %s26, %s27
    %p41 = scmp.eq.s32.totalorder %s19, 1
    %p42 = por %p40, %p41
    %p44 = scmp.ne.s32.totalorder %s27, %s43
    %p45 = scmp.eq.s32.totalorder %s19, 0
    %p46 = por %p44, %p45
    %s48 = sadd.s32 %s47, 1
    %p51 = scmp.eq.s32.totalorder %s13, 1
    %p52 = scmp.ne.s32.totalorder %s47, %s49
    %p53 = scmp.eq.s32.totalorder %s13, 0
    %p54 = por %p52, %p53
    %p55 = scmp.ne.s32.totalorder %s47, %s49
    %p56 = scmp.eq.s32.totalorder %s18, 1
    %p57 = por %p55, %p56
    %p58 = scmp.ne.s32.totalorder %s49, %s50
    %p59 = scmp.eq.s32.totalorder %s18, 0
    %p60 = por %p58, %p59
    %p61 = scmp.ne.s32.totalorder %s49, %s50
    %p62 = scmp.eq.s32.totalorder %s19, 1
    %p63 = por %p61, %p62
    %p65 = scmp.ne.s32.totalorder %s50, %s64
    %p66 = scmp.eq.s32.totalorder %s19, 0
    %p67 = por %p65, %p66
    %s69 = sadd.s32 %s68, 1
    %p72 = scmp.eq.s32.totalorder %s13, 1
    %p73 = scmp.ne.s32.totalorder %s68, %s70
    %p74 = scmp.eq.s32.totalorder %s13, 0
    %p75 = por %p73, %p74
    %p76 = scmp.ne.s32.totalorder %s68, %s70
    %p77 = scmp.eq.s32.totalorder %s18, 1
    %p78 = por %p76, %p77
    %p79 = scmp.ne.s32.totalorder %s70, %s71
    %p80 = scmp.eq.s32.totalorder %s18, 0
    %p81 = por %p79, %p80
    %p82 = scmp.ne.s32.totalorder %s70, %s71
    %p83 = scmp.eq.s32.totalorder %s19, 1
    %p84 = por %p82, %p83
    %p86 = scmp.ne.s32.totalorder %s71, %s85
    %p87 = scmp.eq.s32.totalorder %s19, 0
    %p88 = por %p86, %p87
    %s90 = sadd.s32 %s89, 1
    %p93 = scmp.eq.s32.totalorder %s13, 1
    %p94 = scmp.ne.s32.totalorder %s89, %s91
    %p95 = scmp.eq.s32.totalorder %s13, 0
    %p96 = por %p94, %p95
    %p97 = scmp.ne.s32.totalorder %s89, %s91
    %p98 = scmp.eq.s32.totalorder %s18, 1
    %p99 = por %p97, %p98
    %p100 = scmp.ne.s32.totalorder %s91, %s92
    %p101 = scmp.eq.s32.totalorder %s18, 0
    %p102 = por %p100, %p101
    %p103 = scmp.ne.s32.totalorder %s91, %s92
    %p104 = scmp.eq.s32.totalorder %s19, 1
    %p105 = por %p103, %p104
    %p107 = scmp.ne.s32.totalorder %s92, %s106
    %p108 = scmp.eq.s32.totalorder %s19, 0
    %p109 = por %p107, %p108
    %s111 = sadd.s32 %s110, 1
    %p114 = scmp.eq.s32.totalorder %s13, 1
    %p115 = scmp.ne.s32.totalorder %s110, %s112
    %p116 = scmp.eq.s32.totalorder %s13, 0
    %p117 = por %p115, %p116
    %p118 = scmp.ne.s32.totalorder %s110, %s112
    %p119 = scmp.eq.s32.totalorder %s18, 1
    %p120 = por %p118, %p119
    %p121 = scmp.ne.s32.totalorder %s112, %s113
    %p122 = scmp.eq.s32.totalorder %s18, 0
    %p123 = por %p121, %p122
    %p124 = scmp.ne.s32.totalorder %s112, %s113
    %p125 = scmp.eq.s32.totalorder %s19, 1
    %p126 = por %p124, %p125
    %p128 = scmp.ne.s32.totalorder %s113, %s127
    %p129 = scmp.eq.s32.totalorder %s19, 0
    %p130 = por %p128, %p129
    %s131 = ssub.s32 %s13, %s20
    %p132 = scmp.eq.s32.totalorder %s131, 0
    %s134 = sadd.s32 %s133, 1
    %s135 = scalar_select %p132, %s133, %s134
    %p138 = pneg %p132
    %p139 = scmp.eq.s32.totalorder %s13, 1
    %p140 = por %p138, %p139
    %p141 = scmp.ne.s32.totalorder %s133, %s136
    %p142 = scmp.eq.s32.totalorder %s13, 0
    %p143 = por %p141, %p142
    %p144 = scmp.ne.s32.totalorder %s133, %s136
    %p145 = scmp.eq.s32.totalorder %s18, 1
    %p146 = por %p144, %p145
    %p147 = scmp.ne.s32.totalorder %s136, %s137
    %p148 = scmp.eq.s32.totalorder %s18, 0
    %p149 = por %p147, %p148
    %p150 = scmp.ne.s32.totalorder %s136, %s137
    %p151 = scmp.eq.s32.totalorder %s19, 1
    %p152 = por %p150, %p151
    %p154 = scmp.ne.s32.totalorder %s137, %s153
    %p155 = scmp.eq.s32.totalorder %s19, 0
    %p156 = por %p154, %p155
    %s157 = ssub.s32 %s13, %s20
    %p158 = scmp.eq.s32.totalorder %s157, 0
    %s160 = sadd.s32 %s159, 1
    %s161 = scalar_select %p158, %s159, %s160
    %p164 = pneg %p158
    %p165 = scmp.eq.s32.totalorder %s13, 1
    %p166 = por %p164, %p165
    %p167 = scmp.ne.s32.totalorder %s159, %s162
    %p168 = scmp.eq.s32.totalorder %s13, 0
    %p169 = por %p167, %p168
    %p170 = scmp.ne.s32.totalorder %s159, %s162
    %p171 = scmp.eq.s32.totalorder %s18, 1
    %p172 = por %p170, %p171
    %p173 = scmp.ne.s32.totalorder %s162, %s163
    %p174 = scmp.eq.s32.totalorder %s18, 0
    %p175 = por %p173, %p174
    %p176 = scmp.ne.s32.totalorder %s162, %s163
    %p177 = scmp.eq.s32.totalorder %s19, 1
    %p178 = por %p176, %p177
    %p180 = scmp.ne.s32.totalorder %s163, %s179
    %p181 = scmp.eq.s32.totalorder %s19, 0
    %p182 = por %p180, %p181
    %p183 = scmp.le.s32.totalorder 1, %s13
    %p184 = scmp.lt.s32.totalorder %s13, 3
    %p185 = pnand %p183, %p184
    %p186 = pneg %p185
    // Predicated region
    $region9: #{upsample_block_forward.2} parent=5 // pred_check
      _
    $region10: #{upsample_block_forward.2} parent=5 // pred_check_branch
      %188 = sbr.rel (%p185) target = $region12
    $region11: #{upsample_block_forward.2} parent=5 // pred_region
      %s189 = ssub.s32 %s13, 1
      // Predicated region
      $region13: #{upsample_block_forward.2} parent=11 // pred_check
        %p190 = pneg %p60
      $region14: #{upsample_block_forward.2} parent=11 // pred_check_branch
        %192 = sbr.rel (%p190) target = $region16
      $region15: #{upsample_block_forward.2} parent=11 // pred_region
        _
      $region16: #{upsample_block_forward.2} parent=11 // pred_fallthru
        _
      // Predicated region
      $region17: #{upsample_block_forward.2} parent=11 // pred_check
        %p193 = pneg %p81
      $region18: #{upsample_block_forward.2} parent=11 // pred_check_branch
        %195 = sbr.rel (%p193) target = $region20
      $region19: #{upsample_block_forward.2} parent=11 // pred_region
        _
      $region20: #{upsample_block_forward.2} parent=11 // pred_fallthru
        _
      // Predicated region
      $region21: #{upsample_block_forward.2} parent=11 // pred_check
        %p196 = pneg %p102
      $region22: #{upsample_block_forward.2} parent=11 // pred_check_branch
        %198 = sbr.rel (%p196) target = $region24
      $region23: #{upsample_block_forward.2} parent=11 // pred_region
        _
      $region24: #{upsample_block_forward.2} parent=11 // pred_fallthru
        _
      // Predicated region
      $region25: #{upsample_block_forward.2} parent=11 // pred_check
        %p199 = pneg %p123
      $region26: #{upsample_block_forward.2} parent=11 // pred_check_branch
        %201 = sbr.rel (%p199) target = $region28
      $region27: #{upsample_block_forward.2} parent=11 // pred_region
        _
      $region28: #{upsample_block_forward.2} parent=11 // pred_fallthru
        _
    $region12: #{upsample_block_forward.2} parent=5 // pred_fallthru
      _
    %p202 = scmp.lt.s32.totalorder %s13, 2
    // Predicated region
    $region29: #{upsample_block_forward.2} parent=5 // pred_check
      %p203 = pneg %p202
    $region30: #{upsample_block_forward.2} parent=5 // pred_check_branch
      %205 = sbr.rel (%p203) target = $region32
    $region31: #{upsample_block_forward.2} parent=5 // pred_region
      // Predicated region
      $region33: #{upsample_block_forward.2} parent=31 // pred_check
        %p206 = pneg %p33
      $region34: #{upsample_block_forward.2} parent=31 // pred_check_branch
        %208 = sbr.rel (%p206) target = $region36
      $region35: #{upsample_block_forward.2} parent=31 // pred_region
        %p209 = scmp.lt.s32.totalorder %s13, 1
        %s210 = scalar_select %p209, %s13, 1
        %s211 = smul.addr %s210, 2
        %s212 = smul.addr %s211, 4
        %s213 = scalar_lea.vmem %s0, %s212
      $region36: #{upsample_block_forward.2} parent=31 // pred_fallthru
        _
    $region32: #{upsample_block_forward.2} parent=5 // pred_fallthru
      _
    %p214 = scmp.le.s32.totalorder 1, %s13
    %p215 = scmp.lt.s32.totalorder %s13, 3
    %p216 = pnand %p214, %p215
    %p217 = pneg %p216
    // Predicated region
    $region37: #{upsample_block_forward.2} parent=5 // pred_check
      _
    $region38: #{upsample_block_forward.2} parent=5 // pred_check_branch
      %219 = sbr.rel (%p216) target = $region40
    $region39: #{upsample_block_forward.2} parent=5 // pred_region
      %s220 = ssub.s32 %s13, 1
      %p221 = scmp.lt.s32.totalorder %s18, 1
      %s222 = scalar_select %p221, %s18, 1
      %s223 = smul.addr %s222, 2
      %s224 = smul.addr %s223, 4
      %s225 = scalar_lea.vmem %s0, %s224
      %p226 = pneg %p39
      %p227 = pneg %p36
      %p228 = pneg %p60
      %p229 = pneg %p57
      %p230 = pneg %p81
      %p231 = pneg %p78
      %p232 = pneg %p102
      %p233 = pneg %p99
      %p234 = pneg %p123
      %p235 = pneg %p120
      %p236 = pneg %p149
      %p237 = pneg %p146
      %p238 = scmp.lt.s32.totalorder %s18, 1
      %s239 = scalar_select %p238, %s18, 1
      %s240 = smul.addr %s239, 16
      %s241 = smul.addr %s240, 8
      %s242 = scalar_lea.vmem %s5, %s241
      %p243 = pneg %p175
      %p244 = pneg %p172
      %p245 = scmp.lt.s32.totalorder %s18, 1
      %s246 = scalar_select %p245, %s18, 1
      %s247 = smul.addr %s246, 4
      %s248 = smul.addr %s247, 8
      %s249 = scalar_lea.vmem %s6, %s248
      %p250 = scmp.lt.s32.totalorder %s18, 1
      %s251 = scalar_select %p250, %s18, 1
      %s252 = smul.addr %s251, 2
      %s253 = smul.addr %s252, 4
      %s254 = scalar_lea.vmem %s0, %s253
      %p255 = scmp.lt.s32.totalorder %s18, 1
      %s256 = scalar_select %p255, %s18, 1
      %s257 = smul.addr %s256, 16
      %s258 = smul.addr %s257, 8
      %s259 = scalar_lea.vmem %s5, %s258
      %p260 = scmp.lt.s32.totalorder %s18, 1
      %s261 = scalar_select %p260, %s18, 1
      %s262 = smul.addr %s261, 4
      %s263 = smul.addr %s262, 8
      %s264 = scalar_lea.vmem %s6, %s263
      %v265 = vld [vmem:[%s254] sm:$0xff]
      %v266 = vld [vmem:[%s1] sm:$0xf]
      %268 = vset.pattern.permute.xlu0 0
      %269 = vperm.xlu0 %268, %v266
      %v270 = vpop.permute.xlu0 %269
      %v272 = vunpack.c.l.s4 839922192
      %v273 = vunpack.c.0.s8 %v272
      %v274 = vlaneseq
      %v275 = vshrl.u32 %v274, 7
      %v276 = vsub.s32 %v273, %v275
      %v277 = vrot.slane %v270, %v276
      %v279 = vmul.f32 %v265, %v277
      %v280 = vld [vmem:[%s2] sm:$0xf]
      %282 = vset.pattern.permute.xlu0 0
      %283 = vperm.xlu0 %282, %v280
      %v284 = vpop.permute.xlu0 %283
      %v286 = vunpack.c.l.s4 839922192
      %v287 = vunpack.c.0.s8 %v286
      %v288 = vlaneseq
      %v289 = vshrl.u32 %v288, 7
      %v290 = vsub.s32 %v287, %v289
      %v291 = vrot.slane %v284, %v290
      %v293 = vadd.f32 %v279, %v291
      %v294 = vmax.f32 %v293, 0.0
      %v296 = vcombine.high %v294, %v294
      %v299 = vcombine.low %v265, %v265
      %vm301 = vcmask 1043456
      %v302 = vsel %vm301, %v294, %v299
      %v303 = vsel %vm301, %v296, %v265
      %v304 = vld [vmem:[%s3] sm:$0xff]
      %v305 = vld [vmem:[%s3 + $0x8] sm:$0xff]
      %v306 = vld [vmem:[%s3 + $0x10] sm:$0xff]
      %v307 = vld [vmem:[%s3 + $0x18] sm:$0xff]
      %v308 = vld [vmem:[%s3 + $0x20] sm:$0xff]
      %v309 = vld [vmem:[%s3 + $0x28] sm:$0xff]
      %v310 = vld [vmem:[%s3 + $0x30] sm:$0xff]
      %v311 = vld [vmem:[%s3 + $0x38] sm:$0xff]
      %v312 = vld [vmem:[%s4] sm:$0xff]
      %v313 = vld [vmem:[%s4 + $0x8] sm:$0xff]
      %v314 = vld [vmem:[%s4 + $0x10] sm:$0xff]
      %v315 = vld [vmem:[%s4 + $0x18] sm:$0xff]
      %v316 = vld [vmem:[%s4 + $0x20] sm:$0xff]
      %v317 = vld [vmem:[%s4 + $0x28] sm:$0xff]
      %v318 = vld [vmem:[%s4 + $0x30] sm:$0xff]
      %v319 = vld [vmem:[%s4 + $0x38] sm:$0xff]
      %321 = vset.pattern.permute.xlu0 0
      %322 = vperm.xlu0 %321, %v312
      %v323 = vpop.permute.xlu0 %322
      %326 = vset.pattern.permute.xlu0 0
      %327 = vperm.xlu0 %326, %v313
      %v328 = vpop.permute.xlu0 %327
      %331 = vset.pattern.permute.xlu0 0
      %332 = vperm.xlu0 %331, %v314
      %v333 = vpop.permute.xlu0 %332
      %336 = vset.pattern.permute.xlu0 0
      %337 = vperm.xlu0 %336, %v315
      %v338 = vpop.permute.xlu0 %337
      %341 = vset.pattern.permute.xlu0 0
      %342 = vperm.xlu0 %341, %v316
      %v343 = vpop.permute.xlu0 %342
      %346 = vset.pattern.permute.xlu0 0
      %347 = vperm.xlu0 %346, %v317
      %v348 = vpop.permute.xlu0 %347
      %351 = vset.pattern.permute.xlu0 0
      %352 = vperm.xlu0 %351, %v318
      %v353 = vpop.permute.xlu0 %352
      %356 = vset.pattern.permute.xlu0 0
      %357 = vperm.xlu0 %356, %v319
      %v358 = vpop.permute.xlu0 %357
      %vm360 = vcmask 64512
      %v362 = vsel %vm360, %v304, 0
      %v365 = vsel %vm360, %v305, 0
      %v368 = vsel %vm360, %v306, 0
      %v371 = vsel %vm360, %v307, 0
      %v374 = vsel %vm360, %v308, 0
      %v377 = vsel %vm360, %v309, 0
      %v380 = vsel %vm360, %v310, 0
      %v383 = vsel %vm360, %v311, 0
      %385 = vmatprep.subr.mxu0 %v303
      %386 = vmatpush1.msra.mxu0 %v302
      %387 = vmatprep.subr.mxu0 0.0
      %388 = vmatpush1.msra.mxu0 0.0
      %389 = vmatprep.subr.mxu0 0.0
      %390 = vmatpush1.msra.mxu0 0.0
      %391 = vmatprep.subr.mxu0 0.0
      %392 = vmatpush1.msra.mxu0 0.0
      %393 = vmatprep.subr.mxu0 0.0
      %394 = vmatpush1.msra.mxu0 0.0
      %395 = vmatprep.subr.mxu0 0.0
      %396 = vmatpush1.msra.mxu0 0.0
      %397 = vmatprep.subr.mxu0 0.0
      %398 = vmatpush1.msra.mxu0 0.0
      %399 = vmatprep.subr.mxu0 0.0
      %400 = vmatpush1.msra.mxu0 0.0
      %401 = vmatprep.subr.mxu0 0.0
      %402 = vmatpush1.msra.mxu0 0.0
      %403 = vmatprep.subr.mxu0 0.0
      %404 = vmatpush1.msra.mxu0 0.0
      %405 = vmatprep.subr.mxu0 0.0
      %406 = vmatpush1.msra.mxu0 0.0
      %407 = vmatprep.subr.mxu0 0.0
      %408 = vmatpush1.msra.mxu0 0.0
      %409 = vmatprep.subr.mxu0 0.0
      %410 = vmatpush1.msra.mxu0 0.0
      %411 = vmatprep.subr.mxu0 0.0
      %412 = vmatpush1.msra.mxu0 0.0
      %413 = vmatprep.subr.mxu0 0.0
      %414 = vmatpush1.msra.mxu0 0.0
      %415 = vmatprep.subr.mxu0 0.0
      %416 = vmatpush1.msra.mxu0 0.0
      %417 = vmatprep.subr.mxu0 0.0
      %418 = vmatpush1.msra.mxu0 0.0
      %419 = vmatprep.subr.mxu0 0.0
      %420 = vmatpush1.msra.mxu0 0.0
      %421 = vmatprep.subr.mxu0 0.0
      %422 = vmatpush1.msra.mxu0 0.0
      %423 = vmatprep.subr.mxu0 0.0
      %424 = vmatpush1.msra.mxu0 0.0
      %425 = vmatprep.subr.mxu0 0.0
      %426 = vmatpush1.msra.mxu0 0.0
      %427 = vmatprep.subr.mxu0 0.0
      %428 = vmatpush1.msra.mxu0 0.0
      %429 = vmatprep.subr.mxu0 0.0
      %430 = vmatpush1.msra.mxu0 0.0
      %431 = vmatprep.subr.mxu0 0.0
      %432 = vmatpush1.msra.mxu0 0.0
      %433 = vmatprep.subr.mxu0 0.0
      %434 = vmatpush1.msra.mxu0 0.0
      %435 = vmatprep.subr.mxu0 0.0
      %436 = vmatpush1.msra.mxu0 0.0
      %437 = vmatprep.subr.mxu0 0.0
      %438 = vmatpush1.msra.mxu0 0.0
      %439 = vmatprep.subr.mxu0 0.0
      %440 = vmatpush1.msra.mxu0 0.0
      %441 = vmatprep.subr.mxu0 0.0
      %442 = vmatpush1.msra.mxu0 0.0
      %443 = vmatprep.subr.mxu0 0.0
      %444 = vmatpush1.msra.mxu0 0.0
      %445 = vmatprep.subr.mxu0 0.0
      %446 = vmatpush1.msra.mxu0 0.0
      %447 = vmatprep.subr.mxu0 0.0
      %448 = vmatpush1.msra.mxu0 0.0
      %449 = vmatprep.mubr.f32.mxu0 0.0
      %450 = vmatmul.mubr.f32.gmra.mrb[0].mxu0 %v362
      %v451 = vpop.f32.mrb[0].mxu0
      %v452 = vadd.f32 %v323, %v451
      %v453 = vpop.f32.mrb[0].mxu0
      %v454 = vadd.f32 %v323, %v453
      %455 = vmatprep.mubr.f32.mxu0 0.0
      %456 = vmatmul.mubr.f32.gmra.mrb[0].mxu0 %v365
      %v457 = vpop.f32.mrb[0].mxu0
      %v458 = vadd.f32 %v328, %v457
      %v459 = vpop.f32.mrb[0].mxu0
      %v460 = vadd.f32 %v328, %v459
      %461 = vmatprep.mubr.f32.mxu0 0.0
      %462 = vmatmul.mubr.f32.gmra.mrb[0].mxu0 %v368
      %v463 = vpop.f32.mrb[0].mxu0
      %v464 = vadd.f32 %v333, %v463
      %v465 = vpop.f32.mrb[0].mxu0
      %v466 = vadd.f32 %v333, %v465
      %467 = vmatprep.mubr.f32.mxu0 0.0
      %468 = vmatmul.mubr.f32.gmra.mrb[0].mxu0 %v371
      %v469 = vpop.f32.mrb[0].mxu0
      %v470 = vadd.f32 %v338, %v469
      %v471 = vpop.f32.mrb[0].mxu0
      %v472 = vadd.f32 %v338, %v471
      %473 = vmatprep.mubr.f32.mxu0 0.0
      %474 = vmatmul.mubr.f32.gmra.mrb[0].mxu0 %v374
      %v475 = vpop.f32.mrb[0].mxu0
      %v476 = vadd.f32 %v343, %v475
      %v477 = vpop.f32.mrb[0].mxu0
      %v478 = vadd.f32 %v343, %v477
      %479 = vmatprep.mubr.f32.mxu0 0.0
      %480 = vmatmul.mubr.f32.gmra.mrb[0].mxu0 %v377
      %v481 = vpop.f32.mrb[0].mxu0
      %v482 = vadd.f32 %v348, %v481
      %v483 = vpop.f32.mrb[0].mxu0
      %v484 = vadd.f32 %v348, %v483
      %485 = vmatprep.mubr.f32.mxu0 0.0
      %486 = vmatmul.mubr.f32.gmra.mrb[0].mxu0 %v380
      %v487 = vpop.f32.mrb[0].mxu0
      %v488 = vadd.f32 %v353, %v487
      %v489 = vpop.f32.mrb[0].mxu0
      %v490 = vadd.f32 %v353, %v489
      %491 = vmatprep.mubr.f32.mxu0 0.0
      %492 = vmatmul.mubr.f32.gmra.mrb[0].mxu0 %v383
      %v493 = vpop.f32.mrb[0].mxu0
      %v494 = vadd.f32 %v358, %v493
      %v495 = vpop.f32.mrb[0].mxu0
      %v496 = vadd.f32 %v358, %v495
      %497 = vdwg.mxu0
      %498 = vst [vmem:[%s259] sm:$0xff] %v452
      %499 = vst [vmem:[%s259 + $0x8] sm:$0xff] %v454
      %500 = vst [vmem:[%s259 + $0x10] sm:$0xff] %v458
      %501 = vst [vmem:[%s259 + $0x18] sm:$0xff] %v460
      %502 = vst [vmem:[%s259 + $0x20] sm:$0xff] %v464
      %503 = vst [vmem:[%s259 + $0x28] sm:$0xff] %v466
      %504 = vst [vmem:[%s259 + $0x30] sm:$0xff] %v470
      %505 = vst [vmem:[%s259 + $0x38] sm:$0xff] %v472
      %506 = vst [vmem:[%s259 + $0x40] sm:$0xff] %v476
      %507 = vst [vmem:[%s259 + $0x48] sm:$0xff] %v478
      %508 = vst [vmem:[%s259 + $0x50] sm:$0xff] %v482
      %509 = vst [vmem:[%s259 + $0x58] sm:$0xff] %v484
      %510 = vst [vmem:[%s259 + $0x60] sm:$0xff] %v488
      %511 = vst [vmem:[%s259 + $0x68] sm:$0xff] %v490
      %512 = vst [vmem:[%s259 + $0x70] sm:$0xff] %v494
      %513 = vst [vmem:[%s259 + $0x78] sm:$0xff] %v496
      %v514 = vadd.f32 %v452, %v454
      %515 = vadd.xlane.f32.xlu0 %v514
      %v516 = vpop.xlane.xlu0 %515
      %v517 = vadd.f32 %v458, %v460
      %518 = vadd.xlane.f32.xlu0 %v517
      %v519 = vpop.xlane.xlu0 %518
      %v520 = vadd.f32 %v464, %v466
      %521 = vadd.xlane.f32.xlu0 %v520
      %v522 = vpop.xlane.xlu0 %521
      %v523 = vadd.f32 %v470, %v472
      %524 = vadd.xlane.f32.xlu0 %v523
      %v525 = vpop.xlane.xlu0 %524
      %v526 = vmul.f32 %v452, %v452
      %v527 = vmul.f32 %v454, %v454
      %v528 = vmul.f32 %v458, %v458
      %v529 = vmul.f32 %v460, %v460
      %v530 = vmul.f32 %v464, %v464
      %v531 = vmul.f32 %v466, %v466
      %v532 = vmul.f32 %v470, %v470
      %v533 = vmul.f32 %v472, %v472
      %v534 = vadd.f32 %v526, %v527
      %535 = vadd.xlane.f32.xlu0 %v534
      %v536 = vpop.xlane.xlu0 %535
      %v537 = vadd.f32 %v528, %v529
      %538 = vadd.xlane.f32.xlu0 %v537
      %v539 = vpop.xlane.xlu0 %538
      %v540 = vadd.f32 %v530, %v531
      %541 = vadd.xlane.f32.xlu0 %v540
      %v542 = vpop.xlane.xlu0 %541
      %v543 = vadd.f32 %v532, %v533
      %544 = vadd.xlane.f32.xlu0 %v543
      %v545 = vpop.xlane.xlu0 %544
      %vm546 = vcmask 7168
      %v547 = vsel %vm546, %v516, %v536
      %v548 = vsel %vm546, %v519, %v539
      %v549 = vsel %vm546, %v522, %v542
      %v550 = vsel %vm546, %v525, %v545
      %vm551 = vcmask 15360
      %552 = vst.msk [vmem:[%s264] sm:$0xff] %vm551, %v547
      %553 = vst.msk [vmem:[%s264 + $0x8] sm:$0xff] %vm551, %v548
      %554 = vst.msk [vmem:[%s264 + $0x10] sm:$0xff] %vm551, %v549
      %555 = vst.msk [vmem:[%s264 + $0x18] sm:$0xff] %vm551, %v550
      %p556 = scmp.lt.s32.totalorder %s18, 1
      %s557 = scalar_select %p556, %s18, 1
      %s558 = smul.addr %s557, 16
      %s559 = smul.addr %s558, 8
      %s560 = scalar_lea.vmem %s5, %s559
      %p561 = scmp.lt.s32.totalorder %s18, 1
      %s562 = scalar_select %p561, %s18, 1
      %s563 = smul.addr %s562, 4
      %s564 = smul.addr %s563, 8
      %s565 = scalar_lea.vmem %s6, %s564
      // Predicated region
      $region41: #{upsample_block_forward.2} parent=39 // pred_check
        %p566 = pneg %p146
      $region42: #{upsample_block_forward.2} parent=39 // pred_check_branch
        %568 = sbr.rel (%p566) target = $region44
      $region43: #{upsample_block_forward.2} parent=39 // pred_region
        _
      $region44: #{upsample_block_forward.2} parent=39 // pred_fallthru
        _
      // Predicated region
      $region45: #{upsample_block_forward.2} parent=39 // pred_check
        %p569 = pneg %p172
      $region46: #{upsample_block_forward.2} parent=39 // pred_check_branch
        %571 = sbr.rel (%p569) target = $region48
      $region47: #{upsample_block_forward.2} parent=39 // pred_region
        _
      $region48: #{upsample_block_forward.2} parent=39 // pred_fallthru
        _
    $region40: #{upsample_block_forward.2} parent=5 // pred_fallthru
      _
    %p572 = scmp.le.s32.totalorder 2, %s13
    // Predicated region
    $region49: #{upsample_block_forward.2} parent=5 // pred_check
      %p573 = pneg %p572
    $region50: #{upsample_block_forward.2} parent=5 // pred_check_branch
      %575 = sbr.rel (%p573) target = $region52
    $region51: #{upsample_block_forward.2} parent=5 // pred_region
      %s576 = ssub.s32 %s13, 2
      // Predicated region
      $region53: #{upsample_block_forward.2} parent=51 // pred_check
        %p577 = pneg %p152
      $region54: #{upsample_block_forward.2} parent=51 // pred_check_branch
        %579 = sbr.rel (%p577) target = $region56
      $region55: #{upsample_block_forward.2} parent=51 // pred_region
        %p580 = scmp.lt.s32.totalorder %s19, 1
        %s581 = scalar_select %p580, %s19, 1
        %s582 = smul.addr %s581, 16
        %s583 = smul.addr %s582, 8
        %s584 = scalar_lea.vmem %s5, %s583
      $region56: #{upsample_block_forward.2} parent=51 // pred_fallthru
        _
      // Predicated region
      $region57: #{upsample_block_forward.2} parent=51 // pred_check
        %p585 = pneg %p178
      $region58: #{upsample_block_forward.2} parent=51 // pred_check_branch
        %587 = sbr.rel (%p585) target = $region60
      $region59: #{upsample_block_forward.2} parent=51 // pred_region
        %p588 = scmp.lt.s32.totalorder %s19, 1
        %s589 = scalar_select %p588, %s19, 1
        %s590 = smul.addr %s589, 4
        %s591 = smul.addr %s590, 8
        %s592 = scalar_lea.vmem %s6, %s591
      $region60: #{upsample_block_forward.2} parent=51 // pred_fallthru
        _
    $region52: #{upsample_block_forward.2} parent=5 // pred_fallthru
      _
  $region6: #{upsample_block_forward.2} parent=0 // loop_footer
    %s17 = sadd.s32 1, %s13
  $region7: #{upsample_block_forward.2} parent=0 // loop_footer_branch
    %12 = sbr.rel target = $region3
  $region8: #{upsample_block_forward.2} parent=0 // loop_exit
    _

// kernel: upsample_block_forward.3
$region0: #{upsample_block_forward.3}
  #allocation0 [shape = 'u32[]', space=smem, size = 0x4, offset = 0x4, fixed_abs, tag = 'smem constant byte address 0x4 - core index']
  #allocation1 [shape = 'u32[144,128]{1,0:T(1,128)}', space=vmem, size = 0x12000, scoped, tag = 'internal scratch']
  %s0 = inlined_call_operand.vmem [shape: f32[2,64,256], index: 0, kind: input, shape index: {}]
  %s1 = inlined_call_operand.vmem [shape: f32[32,1], index: 1, kind: input, shape index: {}]
  %s2 = inlined_call_operand.vmem [shape: f32[32,1], index: 2, kind: input, shape index: {}]
  %s3 = inlined_call_operand.vmem [shape: f32[32,128], index: 3, kind: input, shape index: {}]
  %s4 = inlined_call_operand.vmem [shape: f32[32,1], index: 4, kind: input, shape index: {}]
  %s5 = inlined_call_operand.vmem [shape: f32[9,256], index: 5, kind: input, shape index: {}]
  %s6 = inlined_call_operand.vmem [shape: f32[2,32,256], index: 6, kind: output, shape index: {}]
  %s7 = sld [smem:[#allocation0]]
  $region57: #{upsample_block_forward.3} parent=0
    _
  %s9 = ssub.s32 1, %s7
  %s10 = scalar_select 0, %s9, %s7
  loop: start=0, step=1, limit=4
  $region2: #{upsample_block_forward.3} parent=0 // loop_pre_header
    _
  $region3: #{upsample_block_forward.3} parent=0 // loop_header
    %s12 = sphi 0, %s16
    %p13 = scmp.ge.s32.totalorder %s12, 4
    %s22 = sphi 0, %s24
    %s25 = sphi 0, %s22
    %s26 = sphi 0, %s25
    %s42 = sphi 0, %s26
    %s46 = sphi 0, %s46
    %s48 = sphi 0, %s46
    %s49 = sphi 0, %s48
    %s63 = sphi 0, %s49
    %s67 = sphi 0, %s67
    %s69 = sphi 0, %s67
    %s70 = sphi 0, %s69
    %s84 = sphi 0, %s70
    %s88 = sphi 0, %s88
    %s90 = sphi 0, %s88
    %s91 = sphi 0, %s90
    %s105 = sphi 0, %s91
    %s109 = sphi 0, %s109
    %s111 = sphi 0, %s109
    %s112 = sphi 0, %s111
    %s126 = sphi 0, %s112
    %s130 = sphi 0, %s130
    %s132 = sphi 0, %s130
    %s133 = sphi 0, %s132
    %s147 = sphi 0, %s133
    %s153 = sphi 0, %s155
    %s156 = sphi 0, %s153
    %s157 = sphi 0, %s156
    %s173 = sphi 0, %s157
  $region4: #{upsample_block_forward.3} parent=0 // loop_header_branch
    %15 = sbr.rel (%p13) target = $region8
  $region5: #{upsample_block_forward.3} parent=0 // loop_body
    %s17 = ssub.s32 %s12, 1
    %s18 = ssub.s32 %s12, 2
    %s19 = sadd.s32 %s12, 1
    %s20 = ssub.s32 %s12, %s19
    %p21 = scmp.eq.s32.totalorder %s20, 0
    %s23 = sadd.s32 %s22, 1
    %s24 = scalar_select %p21, %s22, %s23
    %p27 = pneg %p21
    %p28 = scmp.eq.s32.totalorder %s12, 1
    %p29 = por %p27, %p28
    %p30 = scmp.ne.s32.totalorder %s22, %s25
    %p31 = scmp.eq.s32.totalorder %s12, 0
    %p32 = por %p30, %p31
    %p33 = scmp.ne.s32.totalorder %s22, %s25
    %p34 = scmp.eq.s32.totalorder %s17, 1
    %p35 = por %p33, %p34
    %p36 = scmp.ne.s32.totalorder %s25, %s26
    %p37 = scmp.eq.s32.totalorder %s17, 0
    %p38 = por %p36, %p37
    %p39 = scmp.ne.s32.totalorder %s25, %s26
    %p40 = scmp.eq.s32.totalorder %s18, 1
    %p41 = por %p39, %p40
    %p43 = scmp.ne.s32.totalorder %s26, %s42
    %p44 = scmp.eq.s32.totalorder %s18, 0
    %p45 = por %p43, %p44
    %s47 = sadd.s32 %s46, 1
    %p50 = scmp.eq.s32.totalorder %s12, 1
    %p51 = scmp.ne.s32.totalorder %s46, %s48
    %p52 = scmp.eq.s32.totalorder %s12, 0
    %p53 = por %p51, %p52
    %p54 = scmp.ne.s32.totalorder %s46, %s48
    %p55 = scmp.eq.s32.totalorder %s17, 1
    %p56 = por %p54, %p55
    %p57 = scmp.ne.s32.totalorder %s48, %s49
    %p58 = scmp.eq.s32.totalorder %s17, 0
    %p59 = por %p57, %p58
    %p60 = scmp.ne.s32.totalorder %s48, %s49
    %p61 = scmp.eq.s32.totalorder %s18, 1
    %p62 = por %p60, %p61
    %p64 = scmp.ne.s32.totalorder %s49, %s63
    %p65 = scmp.eq.s32.totalorder %s18, 0
    %p66 = por %p64, %p65
    %s68 = sadd.s32 %s67, 1
    %p71 = scmp.eq.s32.totalorder %s12, 1
    %p72 = scmp.ne.s32.totalorder %s67, %s69
    %p73 = scmp.eq.s32.totalorder %s12, 0
    %p74 = por %p72, %p73
    %p75 = scmp.ne.s32.totalorder %s67, %s69
    %p76 = scmp.eq.s32.totalorder %s17, 1
    %p77 = por %p75, %p76
    %p78 = scmp.ne.s32.totalorder %s69, %s70
    %p79 = scmp.eq.s32.totalorder %s17, 0
    %p80 = por %p78, %p79
    %p81 = scmp.ne.s32.totalorder %s69, %s70
    %p82 = scmp.eq.s32.totalorder %s18, 1
    %p83 = por %p81, %p82
    %p85 = scmp.ne.s32.totalorder %s70, %s84
    %p86 = scmp.eq.s32.totalorder %s18, 0
    %p87 = por %p85, %p86
    %s89 = sadd.s32 %s88, 1
    %p92 = scmp.eq.s32.totalorder %s12, 1
    %p93 = scmp.ne.s32.totalorder %s88, %s90
    %p94 = scmp.eq.s32.totalorder %s12, 0
    %p95 = por %p93, %p94
    %p96 = scmp.ne.s32.totalorder %s88, %s90
    %p97 = scmp.eq.s32.totalorder %s17, 1
    %p98 = por %p96, %p97
    %p99 = scmp.ne.s32.totalorder %s90, %s91
    %p100 = scmp.eq.s32.totalorder %s17, 0
    %p101 = por %p99, %p100
    %p102 = scmp.ne.s32.totalorder %s90, %s91
    %p103 = scmp.eq.s32.totalorder %s18, 1
    %p104 = por %p102, %p103
    %p106 = scmp.ne.s32.totalorder %s91, %s105
    %p107 = scmp.eq.s32.totalorder %s18, 0
    %p108 = por %p106, %p107
    %s110 = sadd.s32 %s109, 1
    %p113 = scmp.eq.s32.totalorder %s12, 1
    %p114 = scmp.ne.s32.totalorder %s109, %s111
    %p115 = scmp.eq.s32.totalorder %s12, 0
    %p116 = por %p114, %p115
    %p117 = scmp.ne.s32.totalorder %s109, %s111
    %p118 = scmp.eq.s32.totalorder %s17, 1
    %p119 = por %p117, %p118
    %p120 = scmp.ne.s32.totalorder %s111, %s112
    %p121 = scmp.eq.s32.totalorder %s17, 0
    %p122 = por %p120, %p121
    %p123 = scmp.ne.s32.totalorder %s111, %s112
    %p124 = scmp.eq.s32.totalorder %s18, 1
    %p125 = por %p123, %p124
    %p127 = scmp.ne.s32.totalorder %s112, %s126
    %p128 = scmp.eq.s32.totalorder %s18, 0
    %p129 = por %p127, %p128
    %s131 = sadd.s32 %s130, 1
    %p134 = scmp.eq.s32.totalorder %s12, 1
    %p135 = scmp.ne.s32.totalorder %s130, %s132
    %p136 = scmp.eq.s32.totalorder %s12, 0
    %p137 = por %p135, %p136
    %p138 = scmp.ne.s32.totalorder %s130, %s132
    %p139 = scmp.eq.s32.totalorder %s17, 1
    %p140 = por %p138, %p139
    %p141 = scmp.ne.s32.totalorder %s132, %s133
    %p142 = scmp.eq.s32.totalorder %s17, 0
    %p143 = por %p141, %p142
    %p144 = scmp.ne.s32.totalorder %s132, %s133
    %p145 = scmp.eq.s32.totalorder %s18, 1
    %p146 = por %p144, %p145
    %p148 = scmp.ne.s32.totalorder %s133, %s147
    %p149 = scmp.eq.s32.totalorder %s18, 0
    %p150 = por %p148, %p149
    %s151 = ssub.s32 %s12, %s19
    %p152 = scmp.eq.s32.totalorder %s151, 0
    %s154 = sadd.s32 %s153, 1
    %s155 = scalar_select %p152, %s153, %s154
    %p158 = pneg %p152
    %p159 = scmp.eq.s32.totalorder %s12, 1
    %p160 = por %p158, %p159
    %p161 = scmp.ne.s32.totalorder %s153, %s156
    %p162 = scmp.eq.s32.totalorder %s12, 0
    %p163 = por %p161, %p162
    %p164 = scmp.ne.s32.totalorder %s153, %s156
    %p165 = scmp.eq.s32.totalorder %s17, 1
    %p166 = por %p164, %p165
    %p167 = scmp.ne.s32.totalorder %s156, %s157
    %p168 = scmp.eq.s32.totalorder %s17, 0
    %p169 = por %p167, %p168
    %p170 = scmp.ne.s32.totalorder %s156, %s157
    %p171 = scmp.eq.s32.totalorder %s18, 1
    %p172 = por %p170, %p171
    %p174 = scmp.ne.s32.totalorder %s157, %s173
    %p175 = scmp.eq.s32.totalorder %s18, 0
    %p176 = por %p174, %p175
    %p177 = scmp.le.s32.totalorder 1, %s12
    %p178 = scmp.lt.s32.totalorder %s12, 3
    %p179 = pnand %p177, %p178
    %p180 = pneg %p179
    // Predicated region
    $region9: #{upsample_block_forward.3} parent=5 // pred_check
      _
    $region10: #{upsample_block_forward.3} parent=5 // pred_check_branch
      %182 = sbr.rel (%p179) target = $region12
    $region11: #{upsample_block_forward.3} parent=5 // pred_region
      %s183 = ssub.s32 %s12, 1
      // Predicated region
      $region13: #{upsample_block_forward.3} parent=11 // pred_check
        %p184 = pneg %p59
      $region14: #{upsample_block_forward.3} parent=11 // pred_check_branch
        %186 = sbr.rel (%p184) target = $region16
      $region15: #{upsample_block_forward.3} parent=11 // pred_region
        _
      $region16: #{upsample_block_forward.3} parent=11 // pred_fallthru
        _
      // Predicated region
      $region17: #{upsample_block_forward.3} parent=11 // pred_check
        %p187 = pneg %p80
      $region18: #{upsample_block_forward.3} parent=11 // pred_check_branch
        %189 = sbr.rel (%p187) target = $region20
      $region19: #{upsample_block_forward.3} parent=11 // pred_region
        _
      $region20: #{upsample_block_forward.3} parent=11 // pred_fallthru
        _
      // Predicated region
      $region21: #{upsample_block_forward.3} parent=11 // pred_check
        %p190 = pneg %p101
      $region22: #{upsample_block_forward.3} parent=11 // pred_check_branch
        %192 = sbr.rel (%p190) target = $region24
      $region23: #{upsample_block_forward.3} parent=11 // pred_region
        _
      $region24: #{upsample_block_forward.3} parent=11 // pred_fallthru
        _
      // Predicated region
      $region25: #{upsample_block_forward.3} parent=11 // pred_check
        %p193 = pneg %p122
      $region26: #{upsample_block_forward.3} parent=11 // pred_check_branch
        %195 = sbr.rel (%p193) target = $region28
      $region27: #{upsample_block_forward.3} parent=11 // pred_region
        _
      $region28: #{upsample_block_forward.3} parent=11 // pred_fallthru
        _
      // Predicated region
      $region29: #{upsample_block_forward.3} parent=11 // pred_check
        %p196 = pneg %p143
      $region30: #{upsample_block_forward.3} parent=11 // pred_check_branch
        %198 = sbr.rel (%p196) target = $region32
      $region31: #{upsample_block_forward.3} parent=11 // pred_region
        _
      $region32: #{upsample_block_forward.3} parent=11 // pred_fallthru
        _
    $region12: #{upsample_block_forward.3} parent=5 // pred_fallthru
      _
    %p199 = scmp.lt.s32.totalorder %s12, 2
    // Predicated region
    $region33: #{upsample_block_forward.3} parent=5 // pred_check
      %p200 = pneg %p199
    $region34: #{upsample_block_forward.3} parent=5 // pred_check_branch
      %202 = sbr.rel (%p200) target = $region36
    $region35: #{upsample_block_forward.3} parent=5 // pred_region
      // Predicated region
      $region37: #{upsample_block_forward.3} parent=35 // pred_check
        %p203 = pneg %p32
      $region38: #{upsample_block_forward.3} parent=35 // pred_check_branch
        %205 = sbr.rel (%p203) target = $region40
      $region39: #{upsample_block_forward.3} parent=35 // pred_region
        %p206 = scmp.lt.s32.totalorder %s12, 1
        %s207 = scalar_select %p206, %s12, 1
        %s208 = smul.addr %s207, 16
        %s209 = smul.addr %s208, 8
        %s210 = scalar_lea.vmem %s0, %s209
      $region40: #{upsample_block_forward.3} parent=35 // pred_fallthru
        _
    $region36: #{upsample_block_forward.3} parent=5 // pred_fallthru
      _
    %p211 = scmp.le.s32.totalorder 1, %s12
    %p212 = scmp.lt.s32.totalorder %s12, 3
    %p213 = pnand %p211, %p212
    %p214 = pneg %p213
    // Predicated region
    $region41: #{upsample_block_forward.3} parent=5 // pred_check
      _
    $region42: #{upsample_block_forward.3} parent=5 // pred_check_branch
      %216 = sbr.rel (%p213) target = $region44
    $region43: #{upsample_block_forward.3} parent=5 // pred_region
      %s217 = ssub.s32 %s12, 1
      %p218 = scmp.lt.s32.totalorder %s17, 1
      %s219 = scalar_select %p218, %s17, 1
      %s220 = smul.addr %s219, 16
      %s221 = smul.addr %s220, 8
      %s222 = scalar_lea.vmem %s0, %s221
      %p223 = pneg %p38
      %p224 = pneg %p35
      %p225 = pneg %p59
      %p226 = pneg %p56
      %p227 = pneg %p80
      %p228 = pneg %p77
      %p229 = pneg %p101
      %p230 = pneg %p98
      %p231 = pneg %p122
      %p232 = pneg %p119
      %p233 = pneg %p143
      %p234 = pneg %p140
      %p235 = pneg %p169
      %p236 = pneg %p166
      %p237 = scmp.lt.s32.totalorder %s17, 1
      %s238 = scalar_select %p237, %s17, 1
      %s239 = smul.addr %s238, 8
      %s240 = smul.addr %s239, 8
      %s241 = scalar_lea.vmem %s6, %s240
      %p242 = scmp.lt.s32.totalorder %s17, 1
      %s243 = scalar_select %p242, %s17, 1
      %s244 = smul.addr %s243, 16
      %s245 = smul.addr %s244, 8
      %s246 = scalar_lea.vmem %s0, %s245
      %p247 = scmp.lt.s32.totalorder %s17, 1
      %s248 = scalar_select %p247, %s17, 1
      %s249 = smul.addr %s248, 8
      %s250 = smul.addr %s249, 8
      %s251 = scalar_lea.vmem %s6, %s250
      %v252 = vld [vmem:[%s246] sm:$0xff]
      %v253 = vld [vmem:[%s246 + $0x8] sm:$0xff]
      %v254 = vld [vmem:[%s246 + $0x10] sm:$0xff]
      %v255 = vld [vmem:[%s246 + $0x18] sm:$0xff]
      %v256 = vld [vmem:[%s246 + $0x20] sm:$0xff]
      %v257 = vld [vmem:[%s246 + $0x28] sm:$0xff]
      %v258 = vld [vmem:[%s246 + $0x30] sm:$0xff]
      %v259 = vld [vmem:[%s246 + $0x38] sm:$0xff]
      %v260 = vld [vmem:[%s246 + $0x40] sm:$0xff]
      %v261 = vld [vmem:[%s246 + $0x48] sm:$0xff]
      %v262 = vld [vmem:[%s246 + $0x50] sm:$0xff]
      %v263 = vld [vmem:[%s246 + $0x58] sm:$0xff]
      %v264 = vld [vmem:[%s246 + $0x60] sm:$0xff]
      %v265 = vld [vmem:[%s246 + $0x68] sm:$0xff]
      %v266 = vld [vmem:[%s246 + $0x70] sm:$0xff]
      %v267 = vld [vmem:[%s246 + $0x78] sm:$0xff]
      %v268 = vld [vmem:[%s1] sm:$0xff]
      %v269 = vld [vmem:[%s1 + $0x8] sm:$0xff]
      %v270 = vld [vmem:[%s1 + $0x10] sm:$0xff]
      %v271 = vld [vmem:[%s1 + $0x18] sm:$0xff]
      %273 = vset.pattern.permute.xlu0 0
      %274 = vperm.xlu0 %273, %v268
      %v275 = vpop.permute.xlu0 %274
      %278 = vset.pattern.permute.xlu0 0
      %279 = vperm.xlu0 %278, %v269
      %v280 = vpop.permute.xlu0 %279
      %283 = vset.pattern.permute.xlu0 0
      %284 = vperm.xlu0 %283, %v270
      %v285 = vpop.permute.xlu0 %284
      %288 = vset.pattern.permute.xlu0 0
      %289 = vperm.xlu0 %288, %v271
      %v290 = vpop.permute.xlu0 %289
      %v292 = vmul.f32 %v252, %v275
      %v293 = vmul.f32 %v253, %v275
      %v294 = vmul.f32 %v254, %v280
      %v295 = vmul.f32 %v255, %v280
      %v296 = vmul.f32 %v256, %v285
      %v297 = vmul.f32 %v257, %v285
      %v298 = vmul.f32 %v258, %v290
      %v299 = vmul.f32 %v259, %v290
      %v300 = vld [vmem:[%s2] sm:$0xff]
      %v301 = vld [vmem:[%s2 + $0x8] sm:$0xff]
      %v302 = vld [vmem:[%s2 + $0x10] sm:$0xff]
      %v303 = vld [vmem:[%s2 + $0x18] sm:$0xff]
      %305 = vset.pattern.permute.xlu0 0
      %306 = vperm.xlu0 %305, %v300
      %v307 = vpop.permute.xlu0 %306
      %310 = vset.pattern.permute.xlu0 0
      %311 = vperm.xlu0 %310, %v301
      %v312 = vpop.permute.xlu0 %311
      %315 = vset.pattern.permute.xlu0 0
      %316 = vperm.xlu0 %315, %v302
      %v317 = vpop.permute.xlu0 %316
      %320 = vset.pattern.permute.xlu0 0
      %321 = vperm.xlu0 %320, %v303
      %v322 = vpop.permute.xlu0 %321
      %v324 = vadd.f32 %v292, %v307
      %v325 = vadd.f32 %v293, %v307
      %v326 = vadd.f32 %v294, %v312
      %v327 = vadd.f32 %v295, %v312
      %v328 = vadd.f32 %v296, %v317
      %v329 = vadd.f32 %v297, %v317
      %v330 = vadd.f32 %v298, %v322
      %v331 = vadd.f32 %v299, %v322
      %v332 = vmax.f32 %v324, 0.0
      %v333 = vmax.f32 %v325, 0.0
      %v334 = vmax.f32 %v326, 0.0
      %v335 = vmax.f32 %v327, 0.0
      %v336 = vmax.f32 %v328, 0.0
      %v337 = vmax.f32 %v329, 0.0
      %v338 = vmax.f32 %v330, 0.0
      %v339 = vmax.f32 %v331, 0.0
      %342 = vrot.lane.b32.xlu0 %v338, 17
      %v343 = vpop.permute.xlu0 %342
      %344 = vrot.lane.b32.xlu0 %v339, 17
      %v345 = vpop.permute.xlu0 %344
      %vm346 = vcmask 138240
      %v347 = vsel %vm346, %v343, %v345
      %v350 = vsel %vm346, 0.0, %v343
      %v351 = vld [vmem:[%s5] ss:$8 sm:$0x3]
      %v353 = vlaneseq
      %v354 = vshrl.u32 %v353, 7
      %v355 = vsub.s32 0, %v354
      %v356 = vrot.slane %v351, %v355
      %v357 = vlaneseq
      %v358 = vshrl.u32 %v357, 7
      %v359 = vsub.s32 1, %v358
      %v360 = vrot.slane %v351, %v359
      %v363 = vmul.f32 %v350, %v356
      %v364 = vmul.f32 %v347, %v360
      %367 = vrot.lane.b32.xlu0 %v336, 16
      %v368 = vpop.permute.xlu0 %367
      %369 = vrot.lane.b32.xlu0 %v337, 16
      %v370 = vpop.permute.xlu0 %369
      %vm371 = vcmask 130048
      %v372 = vsel %vm371, %v368, %v370
      %v375 = vsel %vm371, 0.0, %v368
      %s376 = scalar_lea.vmem %s5, 1
      %v377 = vld [vmem:[%s376] ss:$8 sm:$0x3]
      %v379 = vlaneseq
      %v380 = vshrl.u32 %v379, 7
      %v381 = vsub.s32 0, %v380
      %v382 = vrot.slane %v377, %v381
      %v383 = vlaneseq
      %v384 = vshrl.u32 %v383, 7
      %v385 = vsub.s32 1, %v384
      %v386 = vrot.slane %v377, %v385
      %v389 = vmul.f32 %v375, %v382
      %v390 = vmul.f32 %v372, %v386
      %391 = vrot.lane.b32.xlu0 %v338, 16
      %v392 = vpop.permute.xlu0 %391
      %393 = vrot.lane.b32.xlu0 %v339, 16
      %v394 = vpop.permute.xlu0 %393
      %v395 = vsel %vm371, %v392, %v394
      %v398 = vsel %vm371, 0.0, %v392
      %v399 = vmul.f32 %v398, %v382
      %v400 = vmul.f32 %v395, %v386
      %401 = vrot.lane.b32.xlu0 %v336, 15
      %v402 = vpop.permute.xlu0 %401
      %403 = vrot.lane.b32.xlu0 %v337, 15
      %v404 = vpop.permute.xlu0 %403
      %vm405 = vcmask 121856
      %v406 = vsel %vm405, %v402, %v404
      %v409 = vsel %vm405, 0.0, %v402
      %s410 = scalar_lea.vmem %s5, 2
      %v411 = vld [vmem:[%s410] ss:$8 sm:$0x3]
      %v413 = vlaneseq
      %v414 = vshrl.u32 %v413, 7
      %v415 = vsub.s32 0, %v414
      %v416 = vrot.slane %v411, %v415
      %v417 = vlaneseq
      %v418 = vshrl.u32 %v417, 7
      %v419 = vsub.s32 1, %v418
      %v420 = vrot.slane %v411, %v419
      %v423 = vmul.f32 %v409, %v416
      %v424 = vmul.f32 %v406, %v420
      %427 = vrot.lane.b32.xlu0 %v334, 1
      %v428 = vpop.permute.xlu0 %427
      %429 = vrot.lane.b32.xlu0 %v335, 1
      %v430 = vpop.permute.xlu0 %429
      %vm431 = vcmask 7168
      %v432 = vsel %vm431, %v428, %v430
      %v435 = vsel %vm431, 0.0, %v428
      %s436 = scalar_lea.vmem %s5, 3
      %v437 = vld [vmem:[%s436] ss:$8 sm:$0x3]
      %v439 = vlaneseq
      %v440 = vshrl.u32 %v439, 7
      %v441 = vsub.s32 0, %v440
      %v442 = vrot.slane %v437, %v441
      %v443 = vlaneseq
      %v444 = vshrl.u32 %v443, 7
      %v445 = vsub.s32 1, %v444
      %v446 = vrot.slane %v437, %v445
      %v449 = vmul.f32 %v435, %v442
      %v450 = vmul.f32 %v432, %v446
      %s451 = scalar_lea.vmem %s5, 4
      %v452 = vld [vmem:[%s451] ss:$8 sm:$0x3]
      %v454 = vlaneseq
      %v455 = vshrl.u32 %v454, 7
      %v456 = vsub.s32 0, %v455
      %v457 = vrot.slane %v452, %v456
      %v458 = vlaneseq
      %v459 = vshrl.u32 %v458, 7
      %v460 = vsub.s32 1, %v459
      %v461 = vrot.slane %v452, %v460
      %v464 = vmul.f32 %v332, %v457
      %v465 = vmul.f32 %v333, %v461
      %v466 = vmul.f32 %v334, %v457
      %v467 = vmul.f32 %v335, %v461
      %470 = vrot.lane.b32.xlu0 %v332, 127
      %v471 = vpop.permute.xlu0 %470
      %472 = vrot.lane.b32.xlu0 %v333, 127
      %v473 = vpop.permute.xlu0 %472
      %vm474 = vcmask 1039360
      %v475 = vsel %vm474, %v471, %v473
      %v478 = vsel %vm474, %v473, 0.0
      %s479 = scalar_lea.vmem %s5, 5
      %v480 = vld [vmem:[%s479] ss:$8 sm:$0x3]
      %v482 = vlaneseq
      %v483 = vshrl.u32 %v482, 7
      %v484 = vsub.s32 0, %v483
      %v485 = vrot.slane %v480, %v484
      %v486 = vlaneseq
      %v487 = vshrl.u32 %v486, 7
      %v488 = vsub.s32 1, %v487
      %v489 = vrot.slane %v480, %v488
      %v492 = vmul.f32 %v475, %v485
      %v493 = vmul.f32 %v478, %v489
      %494 = vrot.lane.b32.xlu0 %v338, 1
      %v495 = vpop.permute.xlu0 %494
      %496 = vrot.lane.b32.xlu0 %v339, 1
      %v497 = vpop.permute.xlu0 %496
      %v498 = vsel %vm431, %v495, %v497
      %v501 = vsel %vm431, 0.0, %v495
      %v502 = vmul.f32 %v501, %v442
      %v503 = vmul.f32 %v498, %v446
      %v504 = vmul.f32 %v336, %v457
      %v505 = vmul.f32 %v337, %v461
      %v506 = vmul.f32 %v338, %v457
      %v507 = vmul.f32 %v339, %v461
      %508 = vrot.lane.b32.xlu0 %v336, 127
      %v509 = vpop.permute.xlu0 %508
      %510 = vrot.lane.b32.xlu0 %v337, 127
      %v511 = vpop.permute.xlu0 %510
      %v512 = vsel %vm474, %v509, %v511
      %v515 = vsel %vm474, %v511, 0.0
      %v516 = vmul.f32 %v512, %v485
      %v517 = vmul.f32 %v515, %v489
      %518 = vrot.lane.b32.xlu0 %v334, 113
      %v519 = vpop.permute.xlu0 %518
      %520 = vrot.lane.b32.xlu0 %v335, 113
      %v521 = vpop.permute.xlu0 %520
      %vm522 = vcmask 924672
      %v523 = vsel %vm522, %v519, %v521
      %v526 = vsel %vm522, %v521, 0.0
      %s527 = scalar_lea.vmem %s5, 6
      %v528 = vld [vmem:[%s527] ss:$8 sm:$0x3]
      %v530 = vlaneseq
      %v531 = vshrl.u32 %v530, 7
      %v532 = vsub.s32 0, %v531
      %v533 = vrot.slane %v528, %v532
      %v534 = vlaneseq
      %v535 = vshrl.u32 %v534, 7
      %v536 = vsub.s32 1, %v535
      %v537 = vrot.slane %v528, %v536
      %v540 = vmul.f32 %v523, %v533
      %v541 = vmul.f32 %v526, %v537
      %542 = vrot.lane.b32.xlu0 %v332, 112
      %v543 = vpop.permute.xlu0 %542
      %544 = vrot.lane.b32.xlu0 %v333, 112
      %v545 = vpop.permute.xlu0 %544
      %vm546 = vcmask 916480
      %v547 = vsel %vm546, %v543, %v545
      %v550 = vsel %vm546, %v545, 0.0
      %s551 = scalar_lea.vmem %s5, 7
      %v552 = vld [vmem:[%s551] ss:$8 sm:$0x3]
      %v554 = vlaneseq
      %v555 = vshrl.u32 %v554, 7
      %v556 = vsub.s32 0, %v555
      %v557 = vrot.slane %v552, %v556
      %v558 = vlaneseq
      %v559 = vshrl.u32 %v558, 7
      %v560 = vsub.s32 1, %v559
      %v561 = vrot.slane %v552, %v560
      %v564 = vmul.f32 %v547, %v557
      %v565 = vmul.f32 %v550, %v561
      %566 = vrot.lane.b32.xlu0 %v334, 112
      %v567 = vpop.permute.xlu0 %566
      %568 = vrot.lane.b32.xlu0 %v335, 112
      %v569 = vpop.permute.xlu0 %568
      %v570 = vsel %vm546, %v567, %v569
      %v573 = vsel %vm546, %v569, 0.0
      %v574 = vmul.f32 %v570, %v557
      %v575 = vmul.f32 %v573, %v561
      %576 = vrot.lane.b32.xlu0 %v332, 111
      %v577 = vpop.permute.xlu0 %576
      %578 = vrot.lane.b32.xlu0 %v333, 111
      %v579 = vpop.permute.xlu0 %578
      %vm580 = vcmask 908288
      %v581 = vsel %vm580, %v577, %v579
      %v584 = vsel %vm580, %v579, 0.0
      %s585 = scalar_lea.vmem %s5, 16
      %v586 = vld [vmem:[%s585] ss:$8 sm:$0x3]
      %v588 = vlaneseq
      %v589 = vshrl.u32 %v588, 7
      %v590 = vsub.s32 0, %v589
      %v591 = vrot.slane %v586, %v590
      %v592 = vlaneseq
      %v593 = vshrl.u32 %v592, 7
      %v594 = vsub.s32 1, %v593
      %v595 = vrot.slane %v586, %v594
      %v598 = vmul.f32 %v581, %v591
      %v599 = vmul.f32 %v584, %v595
      %v600 = vld [vmem:[%s3] sm:$0xff]
      %v601 = vld [vmem:[%s3 + $0x8] sm:$0xff]
      %v602 = vld [vmem:[%s3 + $0x10] sm:$0xff]
      %v603 = vld [vmem:[%s3 + $0x18] sm:$0xff]
      %v604 = vld [vmem:[%s4] sm:$0xff]
      %v605 = vld [vmem:[%s4 + $0x8] sm:$0xff]
      %v606 = vld [vmem:[%s4 + $0x10] sm:$0xff]
      %v607 = vld [vmem:[%s4 + $0x18] sm:$0xff]
      %609 = vset.pattern.permute.xlu0 0
      %610 = vperm.xlu0 %609, %v604
      %v611 = vpop.permute.xlu0 %610
      %614 = vset.pattern.permute.xlu0 0
      %615 = vperm.xlu0 %614, %v605
      %v616 = vpop.permute.xlu0 %615
      %619 = vset.pattern.permute.xlu0 0
      %620 = vperm.xlu0 %619, %v606
      %v621 = vpop.permute.xlu0 %620
      %624 = vset.pattern.permute.xlu0 0
      %625 = vperm.xlu0 %624, %v607
      %v626 = vpop.permute.xlu0 %625
      %628 = vmatprep.subr.mxu0 %v364
      %629 = vmatpush1.msra.mxu0 %v363
      %630 = vmatprep.subr.mxu0 %v390
      %631 = vmatpush1.msra.mxu0 %v389
      %632 = vmatprep.subr.mxu0 %v400
      %633 = vmatpush1.msra.mxu0 %v399
      %634 = vmatprep.subr.mxu0 %v424
      %635 = vmatpush1.msra.mxu0 %v423
      %636 = vmatprep.subr.mxu0 %v450
      %637 = vmatpush1.msra.mxu0 %v449
      %638 = vmatprep.subr.mxu0 %v465
      %639 = vmatpush1.msra.mxu0 %v464
      %640 = vmatprep.subr.mxu0 %v467
      %641 = vmatpush1.msra.mxu0 %v466
      %642 = vmatprep.subr.mxu0 %v493
      %643 = vmatpush1.msra.mxu0 %v492
      %644 = vmatprep.subr.mxu0 %v503
      %645 = vmatpush1.msra.mxu0 %v502
      %646 = vmatprep.subr.mxu0 %v505
      %647 = vmatpush1.msra.mxu0 %v504
      %648 = vmatprep.subr.mxu0 %v507
      %649 = vmatpush1.msra.mxu0 %v506
      %650 = vmatprep.subr.mxu0 %v517
      %651 = vmatpush1.msra.mxu0 %v516
      %652 = vmatprep.subr.mxu0 %v541
      %653 = vmatpush1.msra.mxu0 %v540
      %654 = vmatprep.subr.mxu0 %v565
      %655 = vmatpush1.msra.mxu0 %v564
      %656 = vmatprep.subr.mxu0 %v575
      %657 = vmatpush1.msra.mxu0 %v574
      %658 = vmatprep.subr.mxu0 %v599
      %659 = vmatpush1.msra.mxu0 %v598
      %660 = vmatprep.subr.mxu0 0.0
      %661 = vmatpush1.msra.mxu0 0.0
      %662 = vmatprep.subr.mxu0 0.0
      %663 = vmatpush1.msra.mxu0 0.0
      %664 = vmatprep.subr.mxu0 0.0
      %665 = vmatpush1.msra.mxu0 0.0
      %666 = vmatprep.subr.mxu0 0.0
      %667 = vmatpush1.msra.mxu0 0.0
      %668 = vmatprep.subr.mxu0 0.0
      %669 = vmatpush1.msra.mxu0 0.0
      %670 = vmatprep.subr.mxu0 0.0
      %671 = vmatpush1.msra.mxu0 0.0
      %672 = vmatprep.subr.mxu0 0.0
      %673 = vmatpush1.msra.mxu0 0.0
      %674 = vmatprep.subr.mxu0 0.0
      %675 = vmatpush1.msra.mxu0 0.0
      %676 = vmatprep.subr.mxu0 0.0
      %677 = vmatpush1.msra.mxu0 0.0
      %678 = vmatprep.subr.mxu0 0.0
      %679 = vmatpush1.msra.mxu0 0.0
      %680 = vmatprep.subr.mxu0 0.0
      %681 = vmatpush1.msra.mxu0 0.0
      %682 = vmatprep.subr.mxu0 0.0
      %683 = vmatpush1.msra.mxu0 0.0
      %684 = vmatprep.subr.mxu0 0.0
      %685 = vmatpush1.msra.mxu0 0.0
      %686 = vmatprep.subr.mxu0 0.0
      %687 = vmatpush1.msra.mxu0 0.0
      %688 = vmatprep.subr.mxu0 0.0
      %689 = vmatpush1.msra.mxu0 0.0
      %690 = vmatprep.subr.mxu0 0.0
      %691 = vmatpush1.msra.mxu0 0.0
      %692 = vmatprep.mubr.f32.mxu0 0.0
      %693 = vmatmul.mubr.f32.gmra.mrb[0].mxu0 %v600
      %v694 = vpop.f32.mrb[0].mxu0
      %v695 = vadd.f32 %v611, %v694
      %v696 = vpop.f32.mrb[0].mxu0
      %v697 = vadd.f32 %v611, %v696
      %698 = vmatprep.mubr.f32.mxu0 0.0
      %699 = vmatmul.mubr.f32.gmra.mrb[0].mxu0 %v601
      %v700 = vpop.f32.mrb[0].mxu0
      %v701 = vadd.f32 %v616, %v700
      %v702 = vpop.f32.mrb[0].mxu0
      %v703 = vadd.f32 %v616, %v702
      %704 = vmatprep.mubr.f32.mxu0 0.0
      %705 = vmatmul.mubr.f32.gmra.mrb[0].mxu0 %v602
      %v706 = vpop.f32.mrb[0].mxu0
      %v707 = vadd.f32 %v621, %v706
      %v708 = vpop.f32.mrb[0].mxu0
      %v709 = vadd.f32 %v621, %v708
      %710 = vmatprep.mubr.f32.mxu0 0.0
      %711 = vmatmul.mubr.f32.gmra.mrb[0].mxu0 %v603
      %v712 = vpop.f32.mrb[0].mxu0
      %v713 = vadd.f32 %v626, %v712
      %v714 = vpop.f32.mrb[0].mxu0
      %v715 = vadd.f32 %v626, %v714
      %716 = vdwg.mxu0
      %v717 = vadd.f32 %v695, %v260
      %v718 = vadd.f32 %v697, %v261
      %v719 = vadd.f32 %v701, %v262
      %v720 = vadd.f32 %v703, %v263
      %v721 = vadd.f32 %v707, %v264
      %v722 = vadd.f32 %v709, %v265
      %v723 = vadd.f32 %v713, %v266
      %v724 = vadd.f32 %v715, %v267
      %725 = vst [vmem:[%s251] sm:$0xff] %v717
      %726 = vst [vmem:[%s251 + $0x8] sm:$0xff] %v718
      %727 = vst [vmem:[%s251 + $0x10] sm:$0xff] %v719
      %728 = vst [vmem:[%s251 + $0x18] sm:$0xff] %v720
      %729 = vst [vmem:[%s251 + $0x20] sm:$0xff] %v721
      %730 = vst [vmem:[%s251 + $0x28] sm:$0xff] %v722
      %731 = vst [vmem:[%s251 + $0x30] sm:$0xff] %v723
      %732 = vst [vmem:[%s251 + $0x38] sm:$0xff] %v724
      %p733 = scmp.lt.s32.totalorder %s17, 1
      %s734 = scalar_select %p733, %s17, 1
      %s735 = smul.addr %s734, 8
      %s736 = smul.addr %s735, 8
      %s737 = scalar_lea.vmem %s6, %s736
      // Predicated region
      $region45: #{upsample_block_forward.3} parent=43 // pred_check
        %p738 = pneg %p166
      $region46: #{upsample_block_forward.3} parent=43 // pred_check_branch
        %740 = sbr.rel (%p738) target = $region48
      $region47: #{upsample_block_forward.3} parent=43 // pred_region
        _
      $region48: #{upsample_block_forward.3} parent=43 // pred_fallthru
        _
    $region44: #{upsample_block_forward.3} parent=5 // pred_fallthru
      _
    %p741 = scmp.le.s32.totalorder 2, %s12
    // Predicated region
    $region49: #{upsample_block_forward.3} parent=5 // pred_check
      %p742 = pneg %p741
    $region50: #{upsample_block_forward.3} parent=5 // pred_check_branch
      %744 = sbr.rel (%p742) target = $region52
    $region51: #{upsample_block_forward.3} parent=5 // pred_region
      %s745 = ssub.s32 %s12, 2
      // Predicated region
      $region53: #{upsample_block_forward.3} parent=51 // pred_check
        %p746 = pneg %p172
      $region54: #{upsample_block_forward.3} parent=51 // pred_check_branch
        %748 = sbr.rel (%p746) target = $region56
      $region55: #{upsample_block_forward.3} parent=51 // pred_region
        %p749 = scmp.lt.s32.totalorder %s18, 1
        %s750 = scalar_select %p749, %s18, 1
        %s751 = smul.addr %s750, 8
        %s752 = smul.addr %s751, 8
        %s753 = scalar_lea.vmem %s6, %s752
      $region56: #{upsample_block_forward.3} parent=51 // pred_fallthru
        _
    $region52: #{upsample_block_forward.3} parent=5 // pred_fallthru
      _
  $region6: #{upsample_block_forward.3} parent=0 // loop_footer
    %s16 = sadd.s32 1, %s12
  $region7: #{upsample_block_forward.3} parent=0 // loop_footer_branch
    %11 = sbr.rel target = $region3
  $region8: #{upsample_block_forward.3} parent=0 // loop_exit
    _

</llo_original>
